<compile_context>
chip_gen: v7x
topology: tpu7x:2x2x1
jax: 0.10.0
libtpu: 0.0.40
codegen_flags: <defaults>
</compile_context>

<pallas_src>
import functools
import math

import jax
import jax.numpy as jnp
from jax import lax
from jax.experimental import pallas as pl
from jax.experimental.pallas import tpu as pltpu


def _gelu_tanh(x):
    # tanh GELU (== HF gelu_new); EUP tanh instead of a VALU erf polynomial.
    c = math.sqrt(2.0 / math.pi)
    return 0.5 * x * (1.0 + jnp.tanh(c * (x + 0.044715 * (x * x * x))))


def _layernorm(x, g, b, eps=1e-5):
    mu = jnp.mean(x, axis=-1, keepdims=True)
    xc = x - mu
    var = jnp.mean(xc * xc, axis=-1, keepdims=True)
    return xc * lax.rsqrt(var + eps) * g + b


def _transformer_kernel(n_head,
                        zs_ref,       # [M, kin]      f32 (zero-padded _combine rows)
                        pos_ref,      # [M, E]        f32 (pre-tiled positional emb)
                        vecs_ref,     # [10, E]       f32 packed E-wide vectors
                        wbias_ref,    # [2, 4E]       f32 (b_qkv padded | b_fc)
                        w_small_ref,  # [kin+4E, E]   bf16 (w_in padded | w_mo)
                        w_big_ref,    # [E, 8E]       bf16 (w_qkv | w_ao | w_fc)
                        b_out_ref,    # (1,)          f32 SMEM scalar
                        out_ref):     # [B, T]        f32
    f32 = jnp.float32
    bf16 = jnp.bfloat16

    B, T = out_ref.shape
    M = zs_ref.shape[0]              # = B * T
    kin = zs_ref.shape[1]            # padded input width (multiple of 16)
    E = vecs_ref.shape[1]
    hd = E // n_head

    def vec(i):                      # (1, E) row of the packed vector table
        return vecs_ref[i:i + 1, :]

    b_in, ln1g, ln1b, b_ao = vec(0), vec(1), vec(2), vec(3)
    ln2g, ln2b, b_mo = vec(4), vec(5), vec(6)
    lnfg, lnfb, w_out_row = vec(7), vec(8), vec(9)

    b_qkv = wbias_ref[0:1, 0:3 * E]          # (1, 3E)
    b_fc = wbias_ref[1:2, :]                 # (1, 4E)

    w_in = w_small_ref[0:kin, :]             # (kin, E)  bf16 (pad rows are zero)
    w_mo = w_small_ref[kin:, :]              # (4E, E)   bf16
    w_qkv = w_big_ref[:, 0:3 * E]            # (E, 3E)   bf16
    w_ao = w_big_ref[:, 3 * E:4 * E]         # (E, E)    bf16
    w_fc = w_big_ref[:, 4 * E:]              # (E, 4E)   bf16

    # ---- _read_in + positional embedding (dropout p=0.0 -> identity) ----
    emb = jnp.dot(zs_ref[...].astype(bf16), w_in,
                  preferred_element_type=f32) + b_in                  # [M, E]
    x = emb + pos_ref[...]                                            # f32 residual

    # ---- GPT2 Block 'A': x = x + attn(ln_1(x)) ----
    h1 = _layernorm(x, ln1g, ln1b)
    qkv = jnp.dot(h1.astype(bf16), w_qkv,
                  preferred_element_type=f32) + b_qkv                 # [M, 3E]
    q = qkv[:, 0:E].astype(bf16)
    k = qkv[:, E:2 * E].astype(bf16)
    v = qkv[:, 2 * E:3 * E].astype(bf16)

    def split_heads(a):              # [M, E] -> [n_head*B, T, hd]  (b*h batch dim)
        return jnp.concatenate(
            [a[:, h * hd:(h + 1) * hd].reshape(B, T, hd) for h in range(n_head)],
            axis=0)

    qh, kh, vh = split_heads(q), split_heads(k), split_heads(v)       # [HB, T, hd]

    # Single (T, T) causal mask, broadcast over the b*h batch.
    row = lax.broadcasted_iota(jnp.int32, (T, T), 0)
    col = lax.broadcasted_iota(jnp.int32, (T, T), 1)
    causal = col <= row
    neg = jnp.float32(-1e30)         # finite mask value (no inf-inf NaN risk)
    scale = jnp.float32(1.0 / math.sqrt(hd))

    s = jnp.einsum('bqd,bkd->bqk', qh, kh,
                   preferred_element_type=f32) * scale                # [HB, T, T]
    s = jnp.where(causal, s, neg)
    # Row-max subtraction kept (one batched XLU reduce) for robustness on real weights.
    s = s - jnp.max(s, axis=-1, keepdims=True)
    e = jnp.exp(s)
    p = e * pl.reciprocal(jnp.sum(e, axis=-1, keepdims=True), approx=True)
    o = jnp.einsum('bqk,bkd->bqd', p.astype(bf16), vh,
                   preferred_element_type=f32)                        # [HB, T, hd]

    # Merge heads back to [M, E] and apply attn.c_proj as ONE K=E matmul.
    o_merged = jnp.concatenate(
        [o[h * B:(h + 1) * B].reshape(M, hd) for h in range(n_head)], axis=-1)
    att = jnp.dot(o_merged.astype(bf16), w_ao, preferred_element_type=f32)
    x = x + att + b_ao

    # ---- x = x + mlp(ln_2(x)) ----
    h2 = _layernorm(x, ln2g, ln2b)
    m = jnp.dot(h2.astype(bf16), w_fc, preferred_element_type=f32) + b_fc   # [M, 4E]
    m = _gelu_tanh(m)
    m = jnp.dot(m.astype(bf16), w_mo, preferred_element_type=f32) + b_mo    # [M, E]
    x = x + m

    # ---- ln_f + _read_out (VPU multiply + lane reduce; no MXU pass) ----
    xf = _layernorm(x, lnfg, lnfb).reshape(B, T, E)
    out_ref[...] = jnp.sum(xf * w_out_row, axis=-1) + b_out_ref[0]          # [B, T]


def transformer_forward(xs, ys, params, n_head):
    """xs: [B, n, d_in], ys: [B, n]  ->  y: [B, n]  (regression predictions)."""
    B, n, d_in = xs.shape
    freq = 2
    T = freq * n
    M = B * T
    E = params["w_in"].shape[1]
    f32, bf16 = jnp.float32, jnp.bfloat16

    # _combine: interleave x rows and [y, 0, ..., 0] rows -> zs [B*T, d_in]
    ys_wide = jnp.concatenate(
        [ys[..., None], jnp.zeros((B, n, d_in - 1), xs.dtype)], axis=2)
    zs = jnp.stack([xs, ys_wide], axis=2).reshape(M, d_in)

    # Pad the input width to a bf16 sublane-tile multiple so the w_in / w_mo row-pack
    # can be sliced tile-aligned in-kernel (pad columns / rows are zero).
    kin = max(16, ((d_in + 15) // 16) * 16)
    if kin > d_in:
        zs = jnp.concatenate([zs, jnp.zeros((M, kin - d_in), zs.dtype)], axis=1)

    pos = jnp.tile(params["wpe"][:T], (B, 1))                     # [M, E] pre-tiled

    # Packed parameter tables (cuts ~20 input DMAs down to 7).
    vecs = jnp.concatenate([
        params["b_in"], params["ln1_g"], params["ln1_b"], params["b_ao"],
        params["ln2_g"], params["ln2_b"], params["b_mo"],
        params["lnf_g"], params["lnf_b"], params["w_out"].reshape(1, E),
    ], axis=0).astype(f32)                                        # [10, E]

    b_qkv_pad = jnp.concatenate(
        [params["b_qkv"], jnp.zeros((1, E), f32)], axis=1)        # [1, 4E]
    wbias = jnp.concatenate([b_qkv_pad, params["b_fc"]], axis=0)  # [2, 4E]

    w_in_pad = jnp.zeros((kin, E), f32).at[:d_in, :].set(params["w_in"])
    w_small = jnp.concatenate([w_in_pad, params["w_mo"]], axis=0).astype(bf16)
    w_big = jnp.concatenate(
        [params["w_qkv"], params["w_ao"], params["w_fc"]], axis=1).astype(bf16)

    b_out = params["b_out"].reshape(1).astype(f32)                # (1,) -> SMEM scalar

    vmem = pl.BlockSpec(memory_space=pltpu.MemorySpace.VMEM)
    smem = pl.BlockSpec(memory_space=pltpu.MemorySpace.SMEM)

    # Single gridless step: total footprint (<100 KB) is tiny, kernel is latency-bound.
    pred_bt = pl.pallas_call(
        functools.partial(_transformer_kernel, n_head),
        in_specs=[vmem] * 6 + [smem],
        out_specs=vmem,
        out_shape=jax.ShapeDtypeStruct((B, T), jnp.float32),
    )(zs, pos, vecs, wbias, w_small, w_big, b_out)

    # _read_out selection: prediction[:, ind::freq] with ind=0, freq=2.
    return pred_bt[:, 0::2]


def init_params(key, n_dims, n_embd, n_head, n_layer, block_size):
    """Deterministic synthetic init mirroring the PyTorch shapes/init stds.

    Linear / embedding weights ~ N(0, 0.02); c_proj weights ~ N(0, 0.02/sqrt(2*n_layer));
    biases zero; LayerNorm weight=1, bias=0.  Weights stored as [in, out].
    """
    std = 0.02
    proj_std = 0.02 / math.sqrt(2 * n_layer)
    E = n_embd
    ks = jax.random.split(key, 7)
    params = dict(
        w_in=jax.random.normal(ks[0], (n_dims, E)) * std,
        b_in=jnp.zeros((1, E)),
        wpe=jax.random.normal(ks[1], (block_size, E)) * std,
        ln1_g=jnp.ones((1, E)), ln1_b=jnp.zeros((1, E)),
        w_qkv=jax.random.normal(ks[2], (E, 3 * E)) * std,
        b_qkv=jnp.zeros((1, 3 * E)),
        w_ao=jax.random.normal(ks[3], (E, E)) * proj_std,      # attn.c_proj
        b_ao=jnp.zeros((1, E)),
        ln2_g=jnp.ones((1, E)), ln2_b=jnp.zeros((1, E)),
        w_fc=jax.random.normal(ks[4], (E, 4 * E)) * std,
        b_fc=jnp.zeros((1, 4 * E)),
        w_mo=jax.random.normal(ks[5], (4 * E, E)) * proj_std,   # mlp.c_proj
        b_mo=jnp.zeros((1, E)),
        lnf_g=jnp.ones((1, E)), lnf_b=jnp.zeros((1, E)),
        w_out=jax.random.normal(ks[6], (E, 1)) * std,
        b_out=jnp.zeros((1, 1)),
    )
    return {k: v.astype(jnp.float32) for k, v in params.items()}


if __name__ == "__main__":
    # Small shapes consistent with TransformerModel(n_dims=4, n_positions=8,
    # n_embd=32, n_layer=2, n_head=4, pred_type='regression')
    B, n, d_in = 2, 8, 4
    n_embd, n_head, n_layer = 32, 4, 2
    block_size = 2 * n + 1          # freq * n_positions + 1

    key = jax.random.PRNGKey(0)
    kx, ky, kp = jax.random.split(key, 3)
    xs = jax.random.normal(kx, (B, n, d_in), dtype=jnp.float32)
    ys = jax.random.normal(ky, (B, n), dtype=jnp.float32)
    params = init_params(kp, d_in, n_embd, n_head, n_layer, block_size)

    y = transformer_forward(xs, ys, params, n_head)
    jax.block_until_ready(y)
    assert y.shape == (B, n) and y.dtype == jnp.float32
    assert bool(jnp.all(jnp.isfinite(y)))
    print("KERNEL_OK")
</pallas_src>

<mosaic_0001>
module attributes {stable_mosaic.version = 11 : i64} {
  func.func @_transformer_kernel(%arg0: memref<32x16xf32, #tpu.memory_space<vmem>>, %arg1: memref<32x32xf32, #tpu.memory_space<vmem>>, %arg2: memref<10x32xf32, #tpu.memory_space<vmem>>, %arg3: memref<2x128xf32, #tpu.memory_space<vmem>>, %arg4: memref<144x32xbf16, #tpu.memory_space<vmem>>, %arg5: memref<32x256xbf16, #tpu.memory_space<vmem>>, %arg6: memref<1xf32, #tpu.memory_space<smem>>, %arg7: memref<2x16xf32, #tpu.memory_space<vmem>>) attributes {dimension_semantics = [], scalar_prefetch = 0 : i64, scratch_operands = 0 : i64, tpu.core_type = #tpu.core_type<tc>} {
    %c0 = arith.constant 0 : index
    %c0_0 = arith.constant 0 : index
    %0 = vector.load %arg2[%c0, %c0_0] : memref<10x32xf32, #tpu.memory_space<vmem>>, vector<1x32xf32>
    %c1 = arith.constant 1 : index
    %c0_1 = arith.constant 0 : index
    %1 = vector.load %arg2[%c1, %c0_1] : memref<10x32xf32, #tpu.memory_space<vmem>>, vector<1x32xf32>
    %c2 = arith.constant 2 : index
    %c0_2 = arith.constant 0 : index
    %2 = vector.load %arg2[%c2, %c0_2] : memref<10x32xf32, #tpu.memory_space<vmem>>, vector<1x32xf32>
    %c3 = arith.constant 3 : index
    %c0_3 = arith.constant 0 : index
    %3 = vector.load %arg2[%c3, %c0_3] : memref<10x32xf32, #tpu.memory_space<vmem>>, vector<1x32xf32>
    %c4 = arith.constant 4 : index
    %c0_4 = arith.constant 0 : index
    %4 = vector.load %arg2[%c4, %c0_4] : memref<10x32xf32, #tpu.memory_space<vmem>>, vector<1x32xf32>
    %c5 = arith.constant 5 : index
    %c0_5 = arith.constant 0 : index
    %5 = vector.load %arg2[%c5, %c0_5] : memref<10x32xf32, #tpu.memory_space<vmem>>, vector<1x32xf32>
    %c6 = arith.constant 6 : index
    %c0_6 = arith.constant 0 : index
    %6 = vector.load %arg2[%c6, %c0_6] : memref<10x32xf32, #tpu.memory_space<vmem>>, vector<1x32xf32>
    %c7 = arith.constant 7 : index
    %c0_7 = arith.constant 0 : index
    %7 = vector.load %arg2[%c7, %c0_7] : memref<10x32xf32, #tpu.memory_space<vmem>>, vector<1x32xf32>
    %c8 = arith.constant 8 : index
    %c0_8 = arith.constant 0 : index
    %8 = vector.load %arg2[%c8, %c0_8] : memref<10x32xf32, #tpu.memory_space<vmem>>, vector<1x32xf32>
    %c9 = arith.constant 9 : index
    %c0_9 = arith.constant 0 : index
    %9 = vector.load %arg2[%c9, %c0_9] : memref<10x32xf32, #tpu.memory_space<vmem>>, vector<1x32xf32>
    %c0_10 = arith.constant 0 : index
    %c0_11 = arith.constant 0 : index
    %10 = vector.load %arg3[%c0_10, %c0_11] : memref<2x128xf32, #tpu.memory_space<vmem>>, vector<1x96xf32>
    %c1_12 = arith.constant 1 : index
    %c0_13 = arith.constant 0 : index
    %11 = vector.load %arg3[%c1_12, %c0_13] : memref<2x128xf32, #tpu.memory_space<vmem>>, vector<1x128xf32>
    %c0_14 = arith.constant 0 : index
    %c0_15 = arith.constant 0 : index
    %12 = vector.load %arg4[%c0_14, %c0_15] : memref<144x32xbf16, #tpu.memory_space<vmem>>, vector<16x32xbf16>
    %c16 = arith.constant 16 : index
    %c0_16 = arith.constant 0 : index
    %13 = vector.load %arg4[%c16, %c0_16] : memref<144x32xbf16, #tpu.memory_space<vmem>>, vector<128x32xbf16>
    %c0_17 = arith.constant 0 : index
    %c0_18 = arith.constant 0 : index
    %14 = vector.load %arg5[%c0_17, %c0_18] : memref<32x256xbf16, #tpu.memory_space<vmem>>, vector<32x96xbf16>
    %c0_19 = arith.constant 0 : index
    %c96 = arith.constant 96 : index
    %15 = vector.load %arg5[%c0_19, %c96] : memref<32x256xbf16, #tpu.memory_space<vmem>>, vector<32x32xbf16>
    %c0_20 = arith.constant 0 : index
    %c128 = arith.constant 128 : index
    %16 = vector.load %arg5[%c0_20, %c128] : memref<32x256xbf16, #tpu.memory_space<vmem>>, vector<32x128xbf16>
    %c0_21 = arith.constant 0 : index
    %c0_22 = arith.constant 0 : index
    %17 = vector.load %arg0[%c0_21, %c0_22] : memref<32x16xf32, #tpu.memory_space<vmem>>, vector<32x16xf32>
    %18 = arith.truncf %17 : vector<32x16xf32> to vector<32x16xbf16>
    %cst = arith.constant dense<0.000000e+00> : vector<32x32xf32>
    %19 = tpu.matmul %18, %12, %cst {dimension_numbers = #tpu.dot_dimension_numbers<[1], [0], [0], [1], [0, 0, 1, 1], [], []>} : vector<32x16xbf16>, vector<16x32xbf16>, vector<32x32xf32> -> vector<32x32xf32>
    %20 = vector.broadcast %0 : vector<1x32xf32> to vector<32x32xf32>
    %21 = arith.addf %19, %20 : vector<32x32xf32>
    %c0_23 = arith.constant 0 : index
    %c0_24 = arith.constant 0 : index
    %22 = vector.load %arg1[%c0_23, %c0_24] : memref<32x32xf32, #tpu.memory_space<vmem>>, vector<32x32xf32>
    %23 = arith.addf %21, %22 : vector<32x32xf32>
    %cst_25 = arith.constant dense<0.000000e+00> : vector<32xf32>
    %24 = vector.multi_reduction <add>, %23, %cst_25 [1] : vector<32x32xf32> to vector<32xf32>
    %25 = vector.shape_cast %24 : vector<32xf32> to vector<32x1xf32>
    %cst_26 = arith.constant 3.200000e+01 : f32
    %26 = vector.broadcast %cst_26 : f32 to vector<32x1xf32>
    %27 = arith.divf %25, %26 : vector<32x1xf32>
    %28 = vector.broadcast %27 : vector<32x1xf32> to vector<32x32xf32>
    %29 = arith.subf %23, %28 : vector<32x32xf32>
    %30 = arith.mulf %29, %29 : vector<32x32xf32>
    %cst_27 = arith.constant dense<0.000000e+00> : vector<32xf32>
    %31 = vector.multi_reduction <add>, %30, %cst_27 [1] : vector<32x32xf32> to vector<32xf32>
    %32 = vector.shape_cast %31 : vector<32xf32> to vector<32x1xf32>
    %cst_28 = arith.constant 3.200000e+01 : f32
    %33 = vector.broadcast %cst_28 : f32 to vector<32x1xf32>
    %34 = arith.divf %32, %33 : vector<32x1xf32>
    %cst_29 = arith.constant 9.99999974E-6 : f32
    %35 = vector.broadcast %cst_29 : f32 to vector<32x1xf32>
    %36 = arith.addf %34, %35 : vector<32x1xf32>
    %37 = math.rsqrt %36 : vector<32x1xf32>
    %38 = vector.broadcast %37 : vector<32x1xf32> to vector<32x32xf32>
    %39 = arith.mulf %29, %38 : vector<32x32xf32>
    %40 = vector.broadcast %1 : vector<1x32xf32> to vector<32x32xf32>
    %41 = arith.mulf %39, %40 : vector<32x32xf32>
    %42 = vector.broadcast %2 : vector<1x32xf32> to vector<32x32xf32>
    %43 = arith.addf %41, %42 : vector<32x32xf32>
    %44 = arith.truncf %43 : vector<32x32xf32> to vector<32x32xbf16>
    %cst_30 = arith.constant dense<0.000000e+00> : vector<32x96xf32>
    %45 = tpu.matmul %44, %14, %cst_30 {dimension_numbers = #tpu.dot_dimension_numbers<[1], [0], [0], [1], [0, 0, 1, 1], [], []>} : vector<32x32xbf16>, vector<32x96xbf16>, vector<32x96xf32> -> vector<32x96xf32>
    %46 = vector.broadcast %10 : vector<1x96xf32> to vector<32x96xf32>
    %47 = arith.addf %45, %46 : vector<32x96xf32>
    %48 = vector.extract_strided_slice %47 {offsets = [0, 0], sizes = [32, 32], strides = [1, 1]} : vector<32x96xf32> to vector<32x32xf32>
    %49 = arith.truncf %48 : vector<32x32xf32> to vector<32x32xbf16>
    %50 = vector.extract_strided_slice %47 {offsets = [0, 32], sizes = [32, 32], strides = [1, 1]} : vector<32x96xf32> to vector<32x32xf32>
    %51 = arith.truncf %50 : vector<32x32xf32> to vector<32x32xbf16>
    %52 = vector.extract_strided_slice %47 {offsets = [0, 64], sizes = [32, 32], strides = [1, 1]} : vector<32x96xf32> to vector<32x32xf32>
    %53 = arith.truncf %52 : vector<32x32xf32> to vector<32x32xbf16>
    %54 = vector.extract_strided_slice %49 {offsets = [0, 0], sizes = [32, 8], strides = [1, 1]} : vector<32x32xbf16> to vector<32x8xbf16>
    %55 = vector.shape_cast %54 : vector<32x8xbf16> to vector<2x16x8xbf16>
    %56 = vector.extract_strided_slice %49 {offsets = [0, 8], sizes = [32, 8], strides = [1, 1]} : vector<32x32xbf16> to vector<32x8xbf16>
    %57 = vector.shape_cast %56 : vector<32x8xbf16> to vector<2x16x8xbf16>
    %58 = vector.extract_strided_slice %49 {offsets = [0, 16], sizes = [32, 8], strides = [1, 1]} : vector<32x32xbf16> to vector<32x8xbf16>
    %59 = vector.shape_cast %58 : vector<32x8xbf16> to vector<2x16x8xbf16>
    %60 = vector.extract_strided_slice %49 {offsets = [0, 24], sizes = [32, 8], strides = [1, 1]} : vector<32x32xbf16> to vector<32x8xbf16>
    %61 = vector.shape_cast %60 : vector<32x8xbf16> to vector<2x16x8xbf16>
    %62 = tpu.concatenate %55, %57, %59, %61 in 0 : vector<2x16x8xbf16>, vector<2x16x8xbf16>, vector<2x16x8xbf16>, vector<2x16x8xbf16> -> vector<8x16x8xbf16>
    %63 = vector.extract_strided_slice %51 {offsets = [0, 0], sizes = [32, 8], strides = [1, 1]} : vector<32x32xbf16> to vector<32x8xbf16>
    %64 = vector.shape_cast %63 : vector<32x8xbf16> to vector<2x16x8xbf16>
    %65 = vector.extract_strided_slice %51 {offsets = [0, 8], sizes = [32, 8], strides = [1, 1]} : vector<32x32xbf16> to vector<32x8xbf16>
    %66 = vector.shape_cast %65 : vector<32x8xbf16> to vector<2x16x8xbf16>
    %67 = vector.extract_strided_slice %51 {offsets = [0, 16], sizes = [32, 8], strides = [1, 1]} : vector<32x32xbf16> to vector<32x8xbf16>
    %68 = vector.shape_cast %67 : vector<32x8xbf16> to vector<2x16x8xbf16>
    %69 = vector.extract_strided_slice %51 {offsets = [0, 24], sizes = [32, 8], strides = [1, 1]} : vector<32x32xbf16> to vector<32x8xbf16>
    %70 = vector.shape_cast %69 : vector<32x8xbf16> to vector<2x16x8xbf16>
    %71 = tpu.concatenate %64, %66, %68, %70 in 0 : vector<2x16x8xbf16>, vector<2x16x8xbf16>, vector<2x16x8xbf16>, vector<2x16x8xbf16> -> vector<8x16x8xbf16>
    %72 = vector.extract_strided_slice %53 {offsets = [0, 0], sizes = [32, 8], strides = [1, 1]} : vector<32x32xbf16> to vector<32x8xbf16>
    %73 = vector.shape_cast %72 : vector<32x8xbf16> to vector<2x16x8xbf16>
    %74 = vector.extract_strided_slice %53 {offsets = [0, 8], sizes = [32, 8], strides = [1, 1]} : vector<32x32xbf16> to vector<32x8xbf16>
    %75 = vector.shape_cast %74 : vector<32x8xbf16> to vector<2x16x8xbf16>
    %76 = vector.extract_strided_slice %53 {offsets = [0, 16], sizes = [32, 8], strides = [1, 1]} : vector<32x32xbf16> to vector<32x8xbf16>
    %77 = vector.shape_cast %76 : vector<32x8xbf16> to vector<2x16x8xbf16>
    %78 = vector.extract_strided_slice %53 {offsets = [0, 24], sizes = [32, 8], strides = [1, 1]} : vector<32x32xbf16> to vector<32x8xbf16>
    %79 = vector.shape_cast %78 : vector<32x8xbf16> to vector<2x16x8xbf16>
    %80 = tpu.concatenate %73, %75, %77, %79 in 0 : vector<2x16x8xbf16>, vector<2x16x8xbf16>, vector<2x16x8xbf16>, vector<2x16x8xbf16> -> vector<8x16x8xbf16>
    %81 = tpu.iota {dimensions = array<i32: 0>} : vector<16x16xi32>
    %82 = tpu.iota {dimensions = array<i32: 1>} : vector<16x16xi32>
    %83 = arith.cmpi sle, %82, %81 : vector<16x16xi32>
    "tpu.trace_start"() <{level = 10 : i32, message = "bqd,bkd->bqk"}> : () -> ()
    %cst_31 = arith.constant dense<0.000000e+00> : vector<8x16x16xf32>
    %84 = tpu.matmul %62, %71, %cst_31 {dimension_numbers = #tpu.dot_dimension_numbers<[2], [2], [1], [1], [0, 0, 0, 1, 1, 1], [0], [0]>} : vector<8x16x8xbf16>, vector<8x16x8xbf16>, vector<8x16x16xf32> -> vector<8x16x16xf32>
    "tpu.trace_stop"() : () -> ()
    %cst_32 = arith.constant 0.353553385 : f32
    %85 = vector.broadcast %cst_32 : f32 to vector<8x16x16xf32>
    %86 = arith.mulf %84, %85 : vector<8x16x16xf32>
    %cst_33 = arith.constant -1.000000e+30 : f32
    %87 = vector.shape_cast %83 : vector<16x16xi1> to vector<1x16x16xi1>
    %88 = vector.broadcast %87 : vector<1x16x16xi1> to vector<8x16x16xi1>
    %89 = vector.broadcast %cst_33 : f32 to vector<8x16x16xf32>
    %90 = arith.select %88, %86, %89 : vector<8x16x16xi1>, vector<8x16x16xf32>
    %cst_34 = arith.constant dense<0xFF800000> : vector<8x16xf32>
    %91 = vector.multi_reduction <maximumf>, %90, %cst_34 [2] : vector<8x16x16xf32> to vector<8x16xf32>
    %92 = vector.shape_cast %91 : vector<8x16xf32> to vector<8x16x1xf32>
    %93 = vector.broadcast %92 : vector<8x16x1xf32> to vector<8x16x16xf32>
    %94 = arith.subf %90, %93 : vector<8x16x16xf32>
    %95 = math.exp %94 : vector<8x16x16xf32>
    %cst_35 = arith.constant dense<0.000000e+00> : vector<8x16xf32>
    %96 = vector.multi_reduction <add>, %95, %cst_35 [2] : vector<8x16x16xf32> to vector<8x16xf32>
    %97 = vector.shape_cast %96 : vector<8x16xf32> to vector<8x16x1xf32>
    %98 = tpu.reciprocal %97 {approx = true} : vector<8x16x1xf32> -> vector<8x16x1xf32>
    %99 = vector.broadcast %98 : vector<8x16x1xf32> to vector<8x16x16xf32>
    %100 = arith.mulf %95, %99 : vector<8x16x16xf32>
    %101 = arith.truncf %100 : vector<8x16x16xf32> to vector<8x16x16xbf16>
    "tpu.trace_start"() <{level = 10 : i32, message = "bqk,bkd->bqd"}> : () -> ()
    %cst_36 = arith.constant dense<0.000000e+00> : vector<8x16x8xf32>
    %102 = tpu.matmul %101, %80, %cst_36 {dimension_numbers = #tpu.dot_dimension_numbers<[2], [1], [1], [2], [0, 0, 0, 1, 1, 2], [0], [0]>} : vector<8x16x16xbf16>, vector<8x16x8xbf16>, vector<8x16x8xf32> -> vector<8x16x8xf32>
    "tpu.trace_stop"() : () -> ()
    %103 = vector.extract_strided_slice %102 {offsets = [0, 0, 0], sizes = [2, 16, 8], strides = [1, 1, 1]} : vector<8x16x8xf32> to vector<2x16x8xf32>
    %104 = vector.shape_cast %103 : vector<2x16x8xf32> to vector<32x8xf32>
    %105 = vector.extract_strided_slice %102 {offsets = [2, 0, 0], sizes = [2, 16, 8], strides = [1, 1, 1]} : vector<8x16x8xf32> to vector<2x16x8xf32>
    %106 = vector.shape_cast %105 : vector<2x16x8xf32> to vector<32x8xf32>
    %107 = vector.extract_strided_slice %102 {offsets = [4, 0, 0], sizes = [2, 16, 8], strides = [1, 1, 1]} : vector<8x16x8xf32> to vector<2x16x8xf32>
    %108 = vector.shape_cast %107 : vector<2x16x8xf32> to vector<32x8xf32>
    %109 = vector.extract_strided_slice %102 {offsets = [6, 0, 0], sizes = [2, 16, 8], strides = [1, 1, 1]} : vector<8x16x8xf32> to vector<2x16x8xf32>
    %110 = vector.shape_cast %109 : vector<2x16x8xf32> to vector<32x8xf32>
    %111 = tpu.concatenate %104, %106, %108, %110 in 1 : vector<32x8xf32>, vector<32x8xf32>, vector<32x8xf32>, vector<32x8xf32> -> vector<32x32xf32>
    %112 = arith.truncf %111 : vector<32x32xf32> to vector<32x32xbf16>
    %cst_37 = arith.constant dense<0.000000e+00> : vector<32x32xf32>
    %113 = tpu.matmul %112, %15, %cst_37 {dimension_numbers = #tpu.dot_dimension_numbers<[1], [0], [0], [1], [0, 0, 1, 1], [], []>} : vector<32x32xbf16>, vector<32x32xbf16>, vector<32x32xf32> -> vector<32x32xf32>
    %114 = arith.addf %23, %113 : vector<32x32xf32>
    %115 = vector.broadcast %3 : vector<1x32xf32> to vector<32x32xf32>
    %116 = arith.addf %114, %115 : vector<32x32xf32>
    %cst_38 = arith.constant dense<0.000000e+00> : vector<32xf32>
    %117 = vector.multi_reduction <add>, %116, %cst_38 [1] : vector<32x32xf32> to vector<32xf32>
    %118 = vector.shape_cast %117 : vector<32xf32> to vector<32x1xf32>
    %cst_39 = arith.constant 3.200000e+01 : f32
    %119 = vector.broadcast %cst_39 : f32 to vector<32x1xf32>
    %120 = arith.divf %118, %119 : vector<32x1xf32>
    %121 = vector.broadcast %120 : vector<32x1xf32> to vector<32x32xf32>
    %122 = arith.subf %116, %121 : vector<32x32xf32>
    %123 = arith.mulf %122, %122 : vector<32x32xf32>
    %cst_40 = arith.constant dense<0.000000e+00> : vector<32xf32>
    %124 = vector.multi_reduction <add>, %123, %cst_40 [1] : vector<32x32xf32> to vector<32xf32>
    %125 = vector.shape_cast %124 : vector<32xf32> to vector<32x1xf32>
    %cst_41 = arith.constant 3.200000e+01 : f32
    %126 = vector.broadcast %cst_41 : f32 to vector<32x1xf32>
    %127 = arith.divf %125, %126 : vector<32x1xf32>
    %cst_42 = arith.constant 9.99999974E-6 : f32
    %128 = vector.broadcast %cst_42 : f32 to vector<32x1xf32>
    %129 = arith.addf %127, %128 : vector<32x1xf32>
    %130 = math.rsqrt %129 : vector<32x1xf32>
    %131 = vector.broadcast %130 : vector<32x1xf32> to vector<32x32xf32>
    %132 = arith.mulf %122, %131 : vector<32x32xf32>
    %133 = vector.broadcast %4 : vector<1x32xf32> to vector<32x32xf32>
    %134 = arith.mulf %132, %133 : vector<32x32xf32>
    %135 = vector.broadcast %5 : vector<1x32xf32> to vector<32x32xf32>
    %136 = arith.addf %134, %135 : vector<32x32xf32>
    %137 = arith.truncf %136 : vector<32x32xf32> to vector<32x32xbf16>
    %cst_43 = arith.constant dense<0.000000e+00> : vector<32x128xf32>
    %138 = tpu.matmul %137, %16, %cst_43 {dimension_numbers = #tpu.dot_dimension_numbers<[1], [0], [0], [1], [0, 0, 1, 1], [], []>} : vector<32x32xbf16>, vector<32x128xbf16>, vector<32x128xf32> -> vector<32x128xf32>
    %139 = vector.broadcast %11 : vector<1x128xf32> to vector<32x128xf32>
    %140 = arith.addf %138, %139 : vector<32x128xf32>
    %cst_44 = arith.constant 5.000000e-01 : f32
    %141 = vector.broadcast %cst_44 : f32 to vector<32x128xf32>
    %142 = arith.mulf %141, %140 : vector<32x128xf32>
    %143 = arith.mulf %140, %140 : vector<32x128xf32>
    %144 = arith.mulf %143, %140 : vector<32x128xf32>
    %cst_45 = arith.constant 4.471500e-02 : f32
    %145 = vector.broadcast %cst_45 : f32 to vector<32x128xf32>
    %146 = arith.mulf %145, %144 : vector<32x128xf32>
    %147 = arith.addf %140, %146 : vector<32x128xf32>
    %cst_46 = arith.constant 0.797884583 : f32
    %148 = vector.broadcast %cst_46 : f32 to vector<32x128xf32>
    %149 = arith.mulf %148, %147 : vector<32x128xf32>
    %150 = math.tanh %149 : vector<32x128xf32>
    %cst_47 = arith.constant 1.000000e+00 : f32
    %151 = vector.broadcast %cst_47 : f32 to vector<32x128xf32>
    %152 = arith.addf %151, %150 : vector<32x128xf32>
    %153 = arith.mulf %142, %152 : vector<32x128xf32>
    %154 = arith.truncf %153 : vector<32x128xf32> to vector<32x128xbf16>
    %cst_48 = arith.constant dense<0.000000e+00> : vector<32x32xf32>
    %155 = tpu.matmul %154, %13, %cst_48 {dimension_numbers = #tpu.dot_dimension_numbers<[1], [0], [0], [1], [0, 0, 1, 1], [], []>} : vector<32x128xbf16>, vector<128x32xbf16>, vector<32x32xf32> -> vector<32x32xf32>
    %156 = vector.broadcast %6 : vector<1x32xf32> to vector<32x32xf32>
    %157 = arith.addf %155, %156 : vector<32x32xf32>
    %158 = arith.addf %116, %157 : vector<32x32xf32>
    %cst_49 = arith.constant dense<0.000000e+00> : vector<32xf32>
    %159 = vector.multi_reduction <add>, %158, %cst_49 [1] : vector<32x32xf32> to vector<32xf32>
    %160 = vector.shape_cast %159 : vector<32xf32> to vector<32x1xf32>
    %cst_50 = arith.constant 3.200000e+01 : f32
    %161 = vector.broadcast %cst_50 : f32 to vector<32x1xf32>
    %162 = arith.divf %160, %161 : vector<32x1xf32>
    %163 = vector.broadcast %162 : vector<32x1xf32> to vector<32x32xf32>
    %164 = arith.subf %158, %163 : vector<32x32xf32>
    %165 = arith.mulf %164, %164 : vector<32x32xf32>
    %cst_51 = arith.constant dense<0.000000e+00> : vector<32xf32>
    %166 = vector.multi_reduction <add>, %165, %cst_51 [1] : vector<32x32xf32> to vector<32xf32>
    %167 = vector.shape_cast %166 : vector<32xf32> to vector<32x1xf32>
    %cst_52 = arith.constant 3.200000e+01 : f32
    %168 = vector.broadcast %cst_52 : f32 to vector<32x1xf32>
    %169 = arith.divf %167, %168 : vector<32x1xf32>
    %cst_53 = arith.constant 9.99999974E-6 : f32
    %170 = vector.broadcast %cst_53 : f32 to vector<32x1xf32>
    %171 = arith.addf %169, %170 : vector<32x1xf32>
    %172 = math.rsqrt %171 : vector<32x1xf32>
    %173 = vector.broadcast %172 : vector<32x1xf32> to vector<32x32xf32>
    %174 = arith.mulf %164, %173 : vector<32x32xf32>
    %175 = vector.broadcast %7 : vector<1x32xf32> to vector<32x32xf32>
    %176 = arith.mulf %174, %175 : vector<32x32xf32>
    %177 = vector.broadcast %8 : vector<1x32xf32> to vector<32x32xf32>
    %178 = arith.addf %176, %177 : vector<32x32xf32>
    %179 = vector.shape_cast %178 : vector<32x32xf32> to vector<2x16x32xf32>
    %180 = vector.shape_cast %9 : vector<1x32xf32> to vector<1x1x32xf32>
    %181 = vector.broadcast %180 : vector<1x1x32xf32> to vector<2x16x32xf32>
    %182 = arith.mulf %179, %181 : vector<2x16x32xf32>
    %cst_54 = arith.constant dense<0.000000e+00> : vector<2x16xf32>
    %183 = vector.multi_reduction <add>, %182, %cst_54 [2] : vector<2x16x32xf32> to vector<2x16xf32>
    %c0_55 = arith.constant 0 : index
    %184 = memref.load %arg6[%c0_55] : memref<1xf32, #tpu.memory_space<smem>>
    %185 = vector.broadcast %184 : f32 to vector<2x16xf32>
    %186 = arith.addf %183, %185 : vector<2x16xf32>
    %c0_56 = arith.constant 0 : index
    %c0_57 = arith.constant 0 : index
    %187 = vector.load %arg7[%c0_56, %c0_57] : memref<2x16xf32, #tpu.memory_space<vmem>>, vector<2x16xf32>
    tpu.vector_store %arg7[%c0_56, %c0_57], %186 {strides = array<i32>} : memref<2x16xf32, #tpu.memory_space<vmem>>, vector<2x16xf32>,
    return
  }
}

</mosaic_0001>

<llo_original>
// kernel: tpu_custom_call.1
$region0: #{tpu_custom_call.1}
  #allocation0 [shape = 'u32[]', space=smem, size = 0x4, offset = 0x4, fixed_abs, tag = 'smem constant byte address 0x4 - core index']
  #allocation1 [shape = 'u32[144,128]{1,0:T(1,128)}', space=vmem, size = 0x12000, scoped, tag = 'internal scratch']
  #allocation2 [shape = 'f32[1]{0:T(128)S(6)}', space=smem, size = 0x200, scoped, tag = 'scoped memory for tpu_custom_call.1']
  %s0 = inlined_call_operand.vmem [shape: f32[32,16], index: 0, kind: input, shape index: {}]
  %s1 = inlined_call_operand.vmem [shape: f32[32,32], index: 1, kind: input, shape index: {}]
  %s2 = inlined_call_operand.vmem [shape: f32[10,32], index: 2, kind: input, shape index: {}]
  %s3 = inlined_call_operand.vmem [shape: f32[2,128], index: 3, kind: input, shape index: {}]
  %s4 = inlined_call_operand.vmem [shape: bf16[144,32], index: 4, kind: input, shape index: {}]
  %s5 = inlined_call_operand.vmem [shape: bf16[32,256], index: 5, kind: input, shape index: {}]
  %s6 = inlined_call_operand.<no memory space> [shape: f32[1], index: 6, kind: input, shape index: {}]
  %s7 = inlined_call_operand.hbm [shape: f32[2,16], index: 7, kind: output, shape index: {}]
  %s8 = sld [smem:[#allocation0]]
  $region38: #{tpu_custom_call.1} parent=0
    _
  %s10 = ssub.s32 1, %s8
  %s11 = scalar_select 0, %s10, %s8
  %12 = sst [smem:[#allocation2]] %s6
  $region1: #{tpu_custom_call.1} parent=0
    #allocation3 [shape = 'u8[1024]{0}', space=vmem, size = 0x400, scoped, tag = 'output window, operand 0, single buffered']
    #allocation4 [shape = 's32[1]{0}', space=sflag, size = 0x4, scoped, tag = 'scoped memory for tpu_custom_call.1']
    %13 = vsyncpa [#allocation4], 0
    // Predicated region
    $region2: #{tpu_custom_call.1} parent=1 // pred_check
      _
    $region3: #{tpu_custom_call.1} parent=1 // pred_check_branch
      %15 = sbr.rel (0) target = $region5
    $region4: #{tpu_custom_call.1} parent=1 // pred_region
      _
    $region5: #{tpu_custom_call.1} parent=1 // pred_fallthru
      _
    // Predicated region
    $region6: #{tpu_custom_call.1} parent=1 // pred_check
      _
    $region7: #{tpu_custom_call.1} parent=1 // pred_check_branch
      %17 = sbr.rel (0) target = $region9
    $region8: #{tpu_custom_call.1} parent=1 // pred_region
      _
    $region9: #{tpu_custom_call.1} parent=1 // pred_fallthru
      _
    // Predicated region
    $region10: #{tpu_custom_call.1} parent=1 // pred_check
      _
    $region11: #{tpu_custom_call.1} parent=1 // pred_check_branch
      %19 = sbr.rel (0) target = $region13
    $region12: #{tpu_custom_call.1} parent=1 // pred_region
      _
    $region13: #{tpu_custom_call.1} parent=1 // pred_fallthru
      _
    // Predicated region
    $region14: #{tpu_custom_call.1} parent=1 // pred_check
      _
    $region15: #{tpu_custom_call.1} parent=1 // pred_check_branch
      %21 = sbr.rel (0) target = $region17
    $region16: #{tpu_custom_call.1} parent=1 // pred_region
      _
    $region17: #{tpu_custom_call.1} parent=1 // pred_fallthru
      _
    // Predicated region
    $region18: #{tpu_custom_call.1} parent=1 // pred_check
      _
    $region19: #{tpu_custom_call.1} parent=1 // pred_check_branch
      %23 = sbr.rel (0) target = $region21
    $region20: #{tpu_custom_call.1} parent=1 // pred_region
      _
    $region21: #{tpu_custom_call.1} parent=1 // pred_fallthru
      _
    // Predicated region
    $region22: #{tpu_custom_call.1} parent=1 // pred_check
      _
    $region23: #{tpu_custom_call.1} parent=1 // pred_check_branch
      %25 = sbr.rel (0) target = $region25
    $region24: #{tpu_custom_call.1} parent=1 // pred_region
      _
    $region25: #{tpu_custom_call.1} parent=1 // pred_fallthru
      _
    // Predicated region
    $region26: #{tpu_custom_call.1} parent=1 // pred_check
      _
    $region27: #{tpu_custom_call.1} parent=1 // pred_check_branch
      %27 = sbr.rel (0) target = $region29
    $region28: #{tpu_custom_call.1} parent=1 // pred_region
      _
    $region29: #{tpu_custom_call.1} parent=1 // pred_fallthru
      _
    %v29 = vld [vmem:[%s2] sm:$0x1]
    %v30 = vld [vmem:[%s2 + $0x1] sm:$0x1]
    %v31 = vld [vmem:[%s2 + $0x2] sm:$0x1]
    %v32 = vld [vmem:[%s2 + $0x3] sm:$0x1]
    %v33 = vld [vmem:[%s2 + $0x4] sm:$0x1]
    %v34 = vld [vmem:[%s2 + $0x5] sm:$0x1]
    %v35 = vld [vmem:[%s2 + $0x6] sm:$0x1]
    %v36 = vld [vmem:[%s2 + $0x7] sm:$0x1]
    %v37 = vld [vmem:[%s2 + $0x8] sm:$0x1]
    %v38 = vld [vmem:[%s2 + $0x9] sm:$0x1]
    %v39 = vld [vmem:[%s3] sm:$0x1]
    %v40 = vld [vmem:[%s3 + $0x1] sm:$0x1]
    %v41 = vld [vmem:[%s4] sm:$0xf]
    %v42 = vld [vmem:[%s4 + $0x4] sm:$0xf]
    %v43 = vld [vmem:[%s4 + $0x8] sm:$0xf]
    %v44 = vld [vmem:[%s4 + $0xc] sm:$0xf]
    %v45 = vld [vmem:[%s4 + $0x10] sm:$0xf]
    %v46 = vld [vmem:[%s4 + $0x14] sm:$0xf]
    %v47 = vld [vmem:[%s4 + $0x18] sm:$0xf]
    %v48 = vld [vmem:[%s4 + $0x1c] sm:$0xf]
    %v49 = vld [vmem:[%s4 + $0x20] sm:$0xf]
    %v50 = vld [vmem:[%s4 + $0x24] sm:$0xf]
    %v51 = vld [vmem:[%s4 + $0x28] sm:$0xf]
    %v52 = vld [vmem:[%s4 + $0x2c] sm:$0xf]
    %v53 = vld [vmem:[%s4 + $0x30] sm:$0xf]
    %v54 = vld [vmem:[%s4 + $0x34] sm:$0xf]
    %v55 = vld [vmem:[%s4 + $0x38] sm:$0xf]
    %v56 = vld [vmem:[%s4 + $0x3c] sm:$0xf]
    %v57 = vld [vmem:[%s4 + $0x40] sm:$0xf]
    %v58 = vld [vmem:[%s4 + $0x44] sm:$0xf]
    %v59 = vld [vmem:[%s5] sm:$0xf]
    %v60 = vld [vmem:[%s5 + $0x8] sm:$0xf]
    %v61 = vld [vmem:[%s5 + $0x10] sm:$0xf]
    %v62 = vld [vmem:[%s5 + $0x18] sm:$0xf]
    %v63 = vld [vmem:[%s5 + $0x4] sm:$0xf]
    %v64 = vld [vmem:[%s5 + $0xc] sm:$0xf]
    %v65 = vld [vmem:[%s5 + $0x14] sm:$0xf]
    %v66 = vld [vmem:[%s5 + $0x1c] sm:$0xf]
    %v67 = vld [vmem:[%s0] sm:$0xff]
    %v68 = vld [vmem:[%s0 + $0x8] sm:$0xff]
    %v69 = vld [vmem:[%s0 + $0x10] sm:$0xff]
    %v70 = vld [vmem:[%s0 + $0x18] sm:$0xff]
    %v71 = vpack.c.bf16 %v68, %v67
    %v72 = vpack.c.bf16 %v70, %v69
    %v73 = vlaneseq
    %v74 = vshrl.u32 %v73, 7
    %v75 = vsub.s32 0, %v74
    %v76 = vrot.slane %v29, %v75
    %v79 = vunpack.c.l.b16 %v41
    %v80 = vunpack.c.l.b16 %v42
    %v81 = vpack.c.b16 %v80, %v79
    %vm83 = vcmask 130048
    %v85 = vsel %vm83, %v71, 0
    %v88 = vsel %vm83, %v72, 0
    %90 = vmatprep.subr.bf16.mxu0 0
    %91 = vmatpush1.bf16.msra.mxu0 %v81
    %92 = vmatprep.subr.bf16.mxu0 0
    %93 = vmatpush1.bf16.msra.mxu0 0
    %94 = vmatprep.subr.bf16.mxu0 0
    %95 = vmatpush1.bf16.msra.mxu0 0
    %96 = vmatprep.subr.bf16.mxu0 0
    %97 = vmatpush1.bf16.msra.mxu0 0
    %98 = vmatprep.subr.bf16.mxu0 0
    %99 = vmatpush1.bf16.msra.mxu0 0
    %100 = vmatprep.subr.bf16.mxu0 0
    %101 = vmatpush1.bf16.msra.mxu0 0
    %102 = vmatprep.subr.bf16.mxu0 0
    %103 = vmatpush1.bf16.msra.mxu0 0
    %104 = vmatprep.subr.bf16.mxu0 0
    %105 = vmatpush1.bf16.msra.mxu0 0
    %106 = vmatprep.subr.bf16.mxu0 0
    %107 = vmatpush1.bf16.msra.mxu0 0
    %108 = vmatprep.subr.bf16.mxu0 0
    %109 = vmatpush1.bf16.msra.mxu0 0
    %110 = vmatprep.subr.bf16.mxu0 0
    %111 = vmatpush1.bf16.msra.mxu0 0
    %112 = vmatprep.subr.bf16.mxu0 0
    %113 = vmatpush1.bf16.msra.mxu0 0
    %114 = vmatprep.subr.bf16.mxu0 0
    %115 = vmatpush1.bf16.msra.mxu0 0
    %116 = vmatprep.subr.bf16.mxu0 0
    %117 = vmatpush1.bf16.msra.mxu0 0
    %118 = vmatprep.subr.bf16.mxu0 0
    %119 = vmatpush1.bf16.msra.mxu0 0
    %120 = vmatprep.subr.bf16.mxu0 0
    %121 = vmatpush1.bf16.msra.mxu0 0
    %122 = vmatprep.mubr.bf16.mxu0 0
    %123 = vmatmul.mubr.bf16.gmra.mrb[0].mxu0 %v85
    %v124 = vpop.f32.mrb[0].mxu0
    %v125 = vadd.f32 %v76, %v124
    %v126 = vpop.f32.mrb[0].mxu0
    %v127 = vpop.f32.mrb[0].mxu0
    %v128 = vadd.f32 %v76, %v127
    %v129 = vpop.f32.mrb[0].mxu0
    %130 = vmatprep.mubr.bf16.mxu0 0
    %131 = vmatmul.mubr.bf16.gmra.mrb[0].mxu0 %v88
    %v132 = vpop.f32.mrb[0].mxu0
    %v133 = vadd.f32 %v76, %v132
    %v134 = vpop.f32.mrb[0].mxu0
    %v135 = vpop.f32.mrb[0].mxu0
    %v136 = vadd.f32 %v76, %v135
    %v137 = vpop.f32.mrb[0].mxu0
    %138 = vdwg.mxu0
    %v139 = vld [vmem:[%s1] sm:$0xff]
    %v140 = vld [vmem:[%s1 + $0x8] sm:$0xff]
    %v141 = vld [vmem:[%s1 + $0x10] sm:$0xff]
    %v142 = vld [vmem:[%s1 + $0x18] sm:$0xff]
    %v143 = vadd.f32 %v125, %v139
    %v144 = vadd.f32 %v128, %v140
    %v145 = vadd.f32 %v133, %v141
    %v146 = vadd.f32 %v136, %v142
    %vm147 = vcmask 261120
    %v148 = vsel %vm147, %v143, 0.0
    %149 = vadd.xlane.f32.xlu0 %v148
    %v150 = vpop.xlane.xlu0 %149
    %v151 = vsel %vm147, %v144, 0.0
    %152 = vadd.xlane.f32.xlu0 %v151
    %v153 = vpop.xlane.xlu0 %152
    %v154 = vsel %vm147, %v145, 0.0
    %155 = vadd.xlane.f32.xlu0 %v154
    %v156 = vpop.xlane.xlu0 %155
    %v157 = vsel %vm147, %v146, 0.0
    %158 = vadd.xlane.f32.xlu0 %v157
    %v159 = vpop.xlane.xlu0 %158
    %v160 = vrcp.pop 32.0
    %v161 = vmul.f32 %v150, %v160
    %v162 = vmul.f32 %v153, %v160
    %v163 = vmul.f32 %v156, %v160
    %v164 = vmul.f32 %v159, %v160
    %v165 = vsub.f32 %v143, %v161
    %v166 = vsub.f32 %v144, %v162
    %v167 = vsub.f32 %v145, %v163
    %v168 = vsub.f32 %v146, %v164
    %v169 = vmul.f32 %v165, %v165
    %v170 = vmul.f32 %v166, %v166
    %v171 = vmul.f32 %v167, %v167
    %v172 = vmul.f32 %v168, %v168
    %v173 = vsel %vm147, %v169, 0.0
    %174 = vadd.xlane.f32.xlu0 %v173
    %v175 = vpop.xlane.xlu0 %174
    %v176 = vsel %vm147, %v170, 0.0
    %177 = vadd.xlane.f32.xlu0 %v176
    %v178 = vpop.xlane.xlu0 %177
    %v179 = vsel %vm147, %v171, 0.0
    %180 = vadd.xlane.f32.xlu0 %v179
    %v181 = vpop.xlane.xlu0 %180
    %v182 = vsel %vm147, %v172, 0.0
    %183 = vadd.xlane.f32.xlu0 %v182
    %v184 = vpop.xlane.xlu0 %183
    %v185 = vmul.f32 %v175, %v160
    %v186 = vmul.f32 %v178, %v160
    %v187 = vmul.f32 %v181, %v160
    %v188 = vmul.f32 %v184, %v160
    %v189 = vadd.f32 %v185, 1e-05
    %v190 = vadd.f32 %v186, 1e-05
    %v191 = vadd.f32 %v187, 1e-05
    %v192 = vadd.f32 %v188, 1e-05
    %v193 = vrsqrt.pop %v189
    %v194 = vrsqrt.pop %v190
    %v195 = vrsqrt.pop %v191
    %v196 = vrsqrt.pop %v192
    %v197 = vmul.f32 %v165, %v193
    %v198 = vmul.f32 %v166, %v194
    %v199 = vmul.f32 %v167, %v195
    %v200 = vmul.f32 %v168, %v196
    %v201 = vlaneseq
    %v202 = vshrl.u32 %v201, 7
    %v203 = vsub.s32 0, %v202
    %v204 = vrot.slane %v30, %v203
    %v205 = vmul.f32 %v197, %v204
    %v206 = vmul.f32 %v198, %v204
    %v207 = vmul.f32 %v199, %v204
    %v208 = vmul.f32 %v200, %v204
    %v209 = vlaneseq
    %v210 = vshrl.u32 %v209, 7
    %v211 = vsub.s32 0, %v210
    %v212 = vrot.slane %v31, %v211
    %v213 = vadd.f32 %v205, %v212
    %v214 = vadd.f32 %v206, %v212
    %v215 = vadd.f32 %v207, %v212
    %v216 = vadd.f32 %v208, %v212
    %v217 = vpack.c.bf16 %v214, %v213
    %v218 = vpack.c.bf16 %v216, %v215
    %v219 = vlaneseq
    %v220 = vshrl.u32 %v219, 7
    %v221 = vsub.s32 0, %v220
    %v222 = vrot.slane %v39, %v221
    %v227 = vunpack.c.l.b16 %v59
    %v228 = vunpack.c.l.b16 %v60
    %v229 = vunpack.c.l.b16 %v61
    %v230 = vunpack.c.l.b16 %v62
    %v231 = vpack.c.b16 %v228, %v227
    %v232 = vpack.c.b16 %v230, %v229
    %v236 = vsel %vm147, %v217, 0
    %v239 = vsel %vm147, %v218, 0
    %241 = vmatprep.subr.bf16.mxu0 0
    %242 = vmatpush1.bf16.msra.mxu0 %v231
    %243 = vmatprep.subr.bf16.mxu0 0
    %244 = vmatpush1.bf16.msra.mxu0 %v232
    %245 = vmatprep.subr.bf16.mxu0 0
    %246 = vmatpush1.bf16.msra.mxu0 0
    %247 = vmatprep.subr.bf16.mxu0 0
    %248 = vmatpush1.bf16.msra.mxu0 0
    %249 = vmatprep.subr.bf16.mxu0 0
    %250 = vmatpush1.bf16.msra.mxu0 0
    %251 = vmatprep.subr.bf16.mxu0 0
    %252 = vmatpush1.bf16.msra.mxu0 0
    %253 = vmatprep.subr.bf16.mxu0 0
    %254 = vmatpush1.bf16.msra.mxu0 0
    %255 = vmatprep.subr.bf16.mxu0 0
    %256 = vmatpush1.bf16.msra.mxu0 0
    %257 = vmatprep.subr.bf16.mxu0 0
    %258 = vmatpush1.bf16.msra.mxu0 0
    %259 = vmatprep.subr.bf16.mxu0 0
    %260 = vmatpush1.bf16.msra.mxu0 0
    %261 = vmatprep.subr.bf16.mxu0 0
    %262 = vmatpush1.bf16.msra.mxu0 0
    %263 = vmatprep.subr.bf16.mxu0 0
    %264 = vmatpush1.bf16.msra.mxu0 0
    %265 = vmatprep.subr.bf16.mxu0 0
    %266 = vmatpush1.bf16.msra.mxu0 0
    %267 = vmatprep.subr.bf16.mxu0 0
    %268 = vmatpush1.bf16.msra.mxu0 0
    %269 = vmatprep.subr.bf16.mxu0 0
    %270 = vmatpush1.bf16.msra.mxu0 0
    %271 = vmatprep.subr.bf16.mxu0 0
    %272 = vmatpush1.bf16.msra.mxu0 0
    %273 = vmatprep.mubr.bf16.mxu0 0
    %274 = vmatmul.mubr.bf16.gmra.mrb[0].mxu0 %v236
    %v275 = vpop.f32.mrb[0].mxu0
    %v276 = vadd.f32 %v222, %v275
    %v277 = vpop.f32.mrb[0].mxu0
    %v278 = vpop.f32.mrb[0].mxu0
    %v279 = vadd.f32 %v222, %v278
    %v280 = vpop.f32.mrb[0].mxu0
    %281 = vmatprep.mubr.bf16.mxu0 0
    %282 = vmatmul.mubr.bf16.gmra.mrb[0].mxu0 %v239
    %v283 = vpop.f32.mrb[0].mxu0
    %v284 = vadd.f32 %v222, %v283
    %v285 = vpop.f32.mrb[0].mxu0
    %v286 = vpop.f32.mrb[0].mxu0
    %v287 = vadd.f32 %v222, %v286
    %v288 = vpop.f32.mrb[0].mxu0
    %289 = vdwg.mxu0
    %v290 = vpack.c.bf16 %v279, %v276
    %v291 = vpack.c.bf16 %v287, %v284
    %294 = vrot.lane.b32.xlu0 %v290, 120
    %v295 = vpop.permute.xlu0 %294
    %296 = vrot.lane.b32.xlu0 %v291, 120
    %v297 = vpop.permute.xlu0 %296
    %298 = vrot.lane.b32.xlu0 %v290, 112
    %v299 = vpop.permute.xlu0 %298
    %300 = vrot.lane.b32.xlu0 %v291, 112
    %v301 = vpop.permute.xlu0 %300
    %302 = vrot.lane.b32.xlu0 %v290, 104
    %v303 = vpop.permute.xlu0 %302
    %304 = vrot.lane.b32.xlu0 %v291, 104
    %v305 = vpop.permute.xlu0 %304
    %v306 = vlaneseq
    %v307 = vshrl.u32 %v306, 7
    %v308 = vadd.s32 %v307, 8
    %v309 = vlaneseq
    %v310 = vand.u32 %v309, 127
    %vm311 = vcmp.le.s32.totalorder %v310, %v307
    %vm312 = vcmp.le.s32.totalorder %v310, %v308
    %313 = vrot.lane.b32.xlu0 %v290, 96
    %v314 = vpop.permute.xlu0 %313
    %vm315 = vcmask 64512
    %v317 = vsel %vm315, %v290, 0
    %v320 = vsel %vm315, %v314, 0
    %322 = vmatprep.subr.bf16.mxu0 0
    %323 = vmatpush1.bf16.xpose.msra.mxu0 %v320
    %324 = vmatprep.subr.bf16.mxu0 0
    %325 = vmatpush1.bf16.xpose.msra.mxu0 0
    %326 = vmatprep.subr.bf16.mxu0 0
    %327 = vmatpush1.bf16.xpose.msra.mxu0 0
    %328 = vmatprep.subr.bf16.mxu0 0
    %329 = vmatpush1.bf16.xpose.msra.mxu0 0
    %330 = vmatprep.subr.bf16.mxu0 0
    %331 = vmatpush1.bf16.xpose.msra.mxu0 0
    %332 = vmatprep.subr.bf16.mxu0 0
    %333 = vmatpush1.bf16.xpose.msra.mxu0 0
    %334 = vmatprep.subr.bf16.mxu0 0
    %335 = vmatpush1.bf16.xpose.msra.mxu0 0
    %336 = vmatprep.subr.bf16.mxu0 0
    %337 = vmatpush1.bf16.xpose.msra.mxu0 0
    %338 = vmatprep.subr.bf16.mxu0 0
    %339 = vmatpush1.bf16.xpose.msra.mxu0 0
    %340 = vmatprep.subr.bf16.mxu0 0
    %341 = vmatpush1.bf16.xpose.msra.mxu0 0
    %342 = vmatprep.subr.bf16.mxu0 0
    %343 = vmatpush1.bf16.xpose.msra.mxu0 0
    %344 = vmatprep.subr.bf16.mxu0 0
    %345 = vmatpush1.bf16.xpose.msra.mxu0 0
    %346 = vmatprep.subr.bf16.mxu0 0
    %347 = vmatpush1.bf16.xpose.msra.mxu0 0
    %348 = vmatprep.subr.bf16.mxu0 0
    %349 = vmatpush1.bf16.xpose.msra.mxu0 0
    %350 = vmatprep.subr.bf16.mxu0 0
    %351 = vmatpush1.bf16.xpose.msra.mxu0 0
    %352 = vmatprep.subr.bf16.mxu0 0
    %353 = vmatpush1.bf16.xpose.msra.mxu0 0
    %354 = vmatprep.mubr.bf16.mxu0 0
    %355 = vmatmul.mubr.bf16.gmra.mrb[0].mxu0 %v317
    %v356 = vpop.f32.mrb[0].mxu0
    %v357 = vadd.f32 0.0, %v356
    %v358 = vpop.f32.mrb[0].mxu0
    %v359 = vpop.f32.mrb[0].mxu0
    %v360 = vadd.f32 0.0, %v359
    %v361 = vpop.f32.mrb[0].mxu0
    %362 = vdwg.mxu0
    %363 = vrot.lane.b32.xlu0 %v291, 96
    %v364 = vpop.permute.xlu0 %363
    %v366 = vsel %vm315, %v291, 0
    %v369 = vsel %vm315, %v364, 0
    %371 = vmatprep.subr.bf16.mxu0 0
    %372 = vmatpush1.bf16.xpose.msra.mxu0 %v369
    %373 = vmatprep.subr.bf16.mxu0 0
    %374 = vmatpush1.bf16.xpose.msra.mxu0 0
    %375 = vmatprep.subr.bf16.mxu0 0
    %376 = vmatpush1.bf16.xpose.msra.mxu0 0
    %377 = vmatprep.subr.bf16.mxu0 0
    %378 = vmatpush1.bf16.xpose.msra.mxu0 0
    %379 = vmatprep.subr.bf16.mxu0 0
    %380 = vmatpush1.bf16.xpose.msra.mxu0 0
    %381 = vmatprep.subr.bf16.mxu0 0
    %382 = vmatpush1.bf16.xpose.msra.mxu0 0
    %383 = vmatprep.subr.bf16.mxu0 0
    %384 = vmatpush1.bf16.xpose.msra.mxu0 0
    %385 = vmatprep.subr.bf16.mxu0 0
    %386 = vmatpush1.bf16.xpose.msra.mxu0 0
    %387 = vmatprep.subr.bf16.mxu0 0
    %388 = vmatpush1.bf16.xpose.msra.mxu0 0
    %389 = vmatprep.subr.bf16.mxu0 0
    %390 = vmatpush1.bf16.xpose.msra.mxu0 0
    %391 = vmatprep.subr.bf16.mxu0 0
    %392 = vmatpush1.bf16.xpose.msra.mxu0 0
    %393 = vmatprep.subr.bf16.mxu0 0
    %394 = vmatpush1.bf16.xpose.msra.mxu0 0
    %395 = vmatprep.subr.bf16.mxu0 0
    %396 = vmatpush1.bf16.xpose.msra.mxu0 0
    %397 = vmatprep.subr.bf16.mxu0 0
    %398 = vmatpush1.bf16.xpose.msra.mxu0 0
    %399 = vmatprep.subr.bf16.mxu0 0
    %400 = vmatpush1.bf16.xpose.msra.mxu0 0
    %401 = vmatprep.subr.bf16.mxu0 0
    %402 = vmatpush1.bf16.xpose.msra.mxu0 0
    %403 = vmatprep.mubr.bf16.mxu0 0
    %404 = vmatmul.mubr.bf16.gmra.mrb[0].mxu0 %v366
    %v405 = vpop.f32.mrb[0].mxu0
    %v406 = vadd.f32 0.0, %v405
    %v407 = vpop.f32.mrb[0].mxu0
    %v408 = vpop.f32.mrb[0].mxu0
    %v409 = vadd.f32 0.0, %v408
    %v410 = vpop.f32.mrb[0].mxu0
    %411 = vdwg.mxu0
    %412 = vrot.lane.b32.xlu0 %v295, 96
    %v413 = vpop.permute.xlu0 %412
    %v415 = vsel %vm315, %v295, 0
    %v418 = vsel %vm315, %v413, 0
    %420 = vmatprep.subr.bf16.mxu0 0
    %421 = vmatpush1.bf16.xpose.msra.mxu0 %v418
    %422 = vmatprep.subr.bf16.mxu0 0
    %423 = vmatpush1.bf16.xpose.msra.mxu0 0
    %424 = vmatprep.subr.bf16.mxu0 0
    %425 = vmatpush1.bf16.xpose.msra.mxu0 0
    %426 = vmatprep.subr.bf16.mxu0 0
    %427 = vmatpush1.bf16.xpose.msra.mxu0 0
    %428 = vmatprep.subr.bf16.mxu0 0
    %429 = vmatpush1.bf16.xpose.msra.mxu0 0
    %430 = vmatprep.subr.bf16.mxu0 0
    %431 = vmatpush1.bf16.xpose.msra.mxu0 0
    %432 = vmatprep.subr.bf16.mxu0 0
    %433 = vmatpush1.bf16.xpose.msra.mxu0 0
    %434 = vmatprep.subr.bf16.mxu0 0
    %435 = vmatpush1.bf16.xpose.msra.mxu0 0
    %436 = vmatprep.subr.bf16.mxu0 0
    %437 = vmatpush1.bf16.xpose.msra.mxu0 0
    %438 = vmatprep.subr.bf16.mxu0 0
    %439 = vmatpush1.bf16.xpose.msra.mxu0 0
    %440 = vmatprep.subr.bf16.mxu0 0
    %441 = vmatpush1.bf16.xpose.msra.mxu0 0
    %442 = vmatprep.subr.bf16.mxu0 0
    %443 = vmatpush1.bf16.xpose.msra.mxu0 0
    %444 = vmatprep.subr.bf16.mxu0 0
    %445 = vmatpush1.bf16.xpose.msra.mxu0 0
    %446 = vmatprep.subr.bf16.mxu0 0
    %447 = vmatpush1.bf16.xpose.msra.mxu0 0
    %448 = vmatprep.subr.bf16.mxu0 0
    %449 = vmatpush1.bf16.xpose.msra.mxu0 0
    %450 = vmatprep.subr.bf16.mxu0 0
    %451 = vmatpush1.bf16.xpose.msra.mxu0 0
    %452 = vmatprep.mubr.bf16.mxu0 0
    %453 = vmatmul.mubr.bf16.gmra.mrb[0].mxu0 %v415
    %v454 = vpop.f32.mrb[0].mxu0
    %v455 = vadd.f32 0.0, %v454
    %v456 = vpop.f32.mrb[0].mxu0
    %v457 = vpop.f32.mrb[0].mxu0
    %v458 = vadd.f32 0.0, %v457
    %v459 = vpop.f32.mrb[0].mxu0
    %460 = vdwg.mxu0
    %461 = vrot.lane.b32.xlu0 %v297, 96
    %v462 = vpop.permute.xlu0 %461
    %v464 = vsel %vm315, %v297, 0
    %v467 = vsel %vm315, %v462, 0
    %469 = vmatprep.subr.bf16.mxu0 0
    %470 = vmatpush1.bf16.xpose.msra.mxu0 %v467
    %471 = vmatprep.subr.bf16.mxu0 0
    %472 = vmatpush1.bf16.xpose.msra.mxu0 0
    %473 = vmatprep.subr.bf16.mxu0 0
    %474 = vmatpush1.bf16.xpose.msra.mxu0 0
    %475 = vmatprep.subr.bf16.mxu0 0
    %476 = vmatpush1.bf16.xpose.msra.mxu0 0
    %477 = vmatprep.subr.bf16.mxu0 0
    %478 = vmatpush1.bf16.xpose.msra.mxu0 0
    %479 = vmatprep.subr.bf16.mxu0 0
    %480 = vmatpush1.bf16.xpose.msra.mxu0 0
    %481 = vmatprep.subr.bf16.mxu0 0
    %482 = vmatpush1.bf16.xpose.msra.mxu0 0
    %483 = vmatprep.subr.bf16.mxu0 0
    %484 = vmatpush1.bf16.xpose.msra.mxu0 0
    %485 = vmatprep.subr.bf16.mxu0 0
    %486 = vmatpush1.bf16.xpose.msra.mxu0 0
    %487 = vmatprep.subr.bf16.mxu0 0
    %488 = vmatpush1.bf16.xpose.msra.mxu0 0
    %489 = vmatprep.subr.bf16.mxu0 0
    %490 = vmatpush1.bf16.xpose.msra.mxu0 0
    %491 = vmatprep.subr.bf16.mxu0 0
    %492 = vmatpush1.bf16.xpose.msra.mxu0 0
    %493 = vmatprep.subr.bf16.mxu0 0
    %494 = vmatpush1.bf16.xpose.msra.mxu0 0
    %495 = vmatprep.subr.bf16.mxu0 0
    %496 = vmatpush1.bf16.xpose.msra.mxu0 0
    %497 = vmatprep.subr.bf16.mxu0 0
    %498 = vmatpush1.bf16.xpose.msra.mxu0 0
    %499 = vmatprep.subr.bf16.mxu0 0
    %500 = vmatpush1.bf16.xpose.msra.mxu0 0
    %501 = vmatprep.mubr.bf16.mxu0 0
    %502 = vmatmul.mubr.bf16.gmra.mrb[0].mxu0 %v464
    %v503 = vpop.f32.mrb[0].mxu0
    %v504 = vadd.f32 0.0, %v503
    %v505 = vpop.f32.mrb[0].mxu0
    %v506 = vpop.f32.mrb[0].mxu0
    %v507 = vadd.f32 0.0, %v506
    %v508 = vpop.f32.mrb[0].mxu0
    %509 = vdwg.mxu0
    %510 = vrot.lane.b32.xlu0 %v299, 96
    %v511 = vpop.permute.xlu0 %510
    %v513 = vsel %vm315, %v299, 0
    %v516 = vsel %vm315, %v511, 0
    %518 = vmatprep.subr.bf16.mxu0 0
    %519 = vmatpush1.bf16.xpose.msra.mxu0 %v516
    %520 = vmatprep.subr.bf16.mxu0 0
    %521 = vmatpush1.bf16.xpose.msra.mxu0 0
    %522 = vmatprep.subr.bf16.mxu0 0
    %523 = vmatpush1.bf16.xpose.msra.mxu0 0
    %524 = vmatprep.subr.bf16.mxu0 0
    %525 = vmatpush1.bf16.xpose.msra.mxu0 0
    %526 = vmatprep.subr.bf16.mxu0 0
    %527 = vmatpush1.bf16.xpose.msra.mxu0 0
    %528 = vmatprep.subr.bf16.mxu0 0
    %529 = vmatpush1.bf16.xpose.msra.mxu0 0
    %530 = vmatprep.subr.bf16.mxu0 0
    %531 = vmatpush1.bf16.xpose.msra.mxu0 0
    %532 = vmatprep.subr.bf16.mxu0 0
    %533 = vmatpush1.bf16.xpose.msra.mxu0 0
    %534 = vmatprep.subr.bf16.mxu0 0
    %535 = vmatpush1.bf16.xpose.msra.mxu0 0
    %536 = vmatprep.subr.bf16.mxu0 0
    %537 = vmatpush1.bf16.xpose.msra.mxu0 0
    %538 = vmatprep.subr.bf16.mxu0 0
    %539 = vmatpush1.bf16.xpose.msra.mxu0 0
    %540 = vmatprep.subr.bf16.mxu0 0
    %541 = vmatpush1.bf16.xpose.msra.mxu0 0
    %542 = vmatprep.subr.bf16.mxu0 0
    %543 = vmatpush1.bf16.xpose.msra.mxu0 0
    %544 = vmatprep.subr.bf16.mxu0 0
    %545 = vmatpush1.bf16.xpose.msra.mxu0 0
    %546 = vmatprep.subr.bf16.mxu0 0
    %547 = vmatpush1.bf16.xpose.msra.mxu0 0
    %548 = vmatprep.subr.bf16.mxu0 0
    %549 = vmatpush1.bf16.xpose.msra.mxu0 0
    %550 = vmatprep.mubr.bf16.mxu0 0
    %551 = vmatmul.mubr.bf16.gmra.mrb[0].mxu0 %v513
    %v552 = vpop.f32.mrb[0].mxu0
    %v553 = vadd.f32 0.0, %v552
    %v554 = vpop.f32.mrb[0].mxu0
    %v555 = vpop.f32.mrb[0].mxu0
    %v556 = vadd.f32 0.0, %v555
    %v557 = vpop.f32.mrb[0].mxu0
    %558 = vdwg.mxu0
    %559 = vrot.lane.b32.xlu0 %v301, 96
    %v560 = vpop.permute.xlu0 %559
    %v562 = vsel %vm315, %v301, 0
    %v565 = vsel %vm315, %v560, 0
    %567 = vmatprep.subr.bf16.mxu0 0
    %568 = vmatpush1.bf16.xpose.msra.mxu0 %v565
    %569 = vmatprep.subr.bf16.mxu0 0
    %570 = vmatpush1.bf16.xpose.msra.mxu0 0
    %571 = vmatprep.subr.bf16.mxu0 0
    %572 = vmatpush1.bf16.xpose.msra.mxu0 0
    %573 = vmatprep.subr.bf16.mxu0 0
    %574 = vmatpush1.bf16.xpose.msra.mxu0 0
    %575 = vmatprep.subr.bf16.mxu0 0
    %576 = vmatpush1.bf16.xpose.msra.mxu0 0
    %577 = vmatprep.subr.bf16.mxu0 0
    %578 = vmatpush1.bf16.xpose.msra.mxu0 0
    %579 = vmatprep.subr.bf16.mxu0 0
    %580 = vmatpush1.bf16.xpose.msra.mxu0 0
    %581 = vmatprep.subr.bf16.mxu0 0
    %582 = vmatpush1.bf16.xpose.msra.mxu0 0
    %583 = vmatprep.subr.bf16.mxu0 0
    %584 = vmatpush1.bf16.xpose.msra.mxu0 0
    %585 = vmatprep.subr.bf16.mxu0 0
    %586 = vmatpush1.bf16.xpose.msra.mxu0 0
    %587 = vmatprep.subr.bf16.mxu0 0
    %588 = vmatpush1.bf16.xpose.msra.mxu0 0
    %589 = vmatprep.subr.bf16.mxu0 0
    %590 = vmatpush1.bf16.xpose.msra.mxu0 0
    %591 = vmatprep.subr.bf16.mxu0 0
    %592 = vmatpush1.bf16.xpose.msra.mxu0 0
    %593 = vmatprep.subr.bf16.mxu0 0
    %594 = vmatpush1.bf16.xpose.msra.mxu0 0
    %595 = vmatprep.subr.bf16.mxu0 0
    %596 = vmatpush1.bf16.xpose.msra.mxu0 0
    %597 = vmatprep.subr.bf16.mxu0 0
    %598 = vmatpush1.bf16.xpose.msra.mxu0 0
    %599 = vmatprep.mubr.bf16.mxu0 0
    %600 = vmatmul.mubr.bf16.gmra.mrb[0].mxu0 %v562
    %v601 = vpop.f32.mrb[0].mxu0
    %v602 = vadd.f32 0.0, %v601
    %v603 = vpop.f32.mrb[0].mxu0
    %v604 = vpop.f32.mrb[0].mxu0
    %v605 = vadd.f32 0.0, %v604
    %v606 = vpop.f32.mrb[0].mxu0
    %607 = vdwg.mxu0
    %608 = vrot.lane.b32.xlu0 %v303, 96
    %v609 = vpop.permute.xlu0 %608
    %v611 = vsel %vm315, %v303, 0
    %v614 = vsel %vm315, %v609, 0
    %616 = vmatprep.subr.bf16.mxu0 0
    %617 = vmatpush1.bf16.xpose.msra.mxu0 %v614
    %618 = vmatprep.subr.bf16.mxu0 0
    %619 = vmatpush1.bf16.xpose.msra.mxu0 0
    %620 = vmatprep.subr.bf16.mxu0 0
    %621 = vmatpush1.bf16.xpose.msra.mxu0 0
    %622 = vmatprep.subr.bf16.mxu0 0
    %623 = vmatpush1.bf16.xpose.msra.mxu0 0
    %624 = vmatprep.subr.bf16.mxu0 0
    %625 = vmatpush1.bf16.xpose.msra.mxu0 0
    %626 = vmatprep.subr.bf16.mxu0 0
    %627 = vmatpush1.bf16.xpose.msra.mxu0 0
    %628 = vmatprep.subr.bf16.mxu0 0
    %629 = vmatpush1.bf16.xpose.msra.mxu0 0
    %630 = vmatprep.subr.bf16.mxu0 0
    %631 = vmatpush1.bf16.xpose.msra.mxu0 0
    %632 = vmatprep.subr.bf16.mxu0 0
    %633 = vmatpush1.bf16.xpose.msra.mxu0 0
    %634 = vmatprep.subr.bf16.mxu0 0
    %635 = vmatpush1.bf16.xpose.msra.mxu0 0
    %636 = vmatprep.subr.bf16.mxu0 0
    %637 = vmatpush1.bf16.xpose.msra.mxu0 0
    %638 = vmatprep.subr.bf16.mxu0 0
    %639 = vmatpush1.bf16.xpose.msra.mxu0 0
    %640 = vmatprep.subr.bf16.mxu0 0
    %641 = vmatpush1.bf16.xpose.msra.mxu0 0
    %642 = vmatprep.subr.bf16.mxu0 0
    %643 = vmatpush1.bf16.xpose.msra.mxu0 0
    %644 = vmatprep.subr.bf16.mxu0 0
    %645 = vmatpush1.bf16.xpose.msra.mxu0 0
    %646 = vmatprep.subr.bf16.mxu0 0
    %647 = vmatpush1.bf16.xpose.msra.mxu0 0
    %648 = vmatprep.mubr.bf16.mxu0 0
    %649 = vmatmul.mubr.bf16.gmra.mrb[0].mxu0 %v611
    %v650 = vpop.f32.mrb[0].mxu0
    %v651 = vadd.f32 0.0, %v650
    %v652 = vpop.f32.mrb[0].mxu0
    %v653 = vpop.f32.mrb[0].mxu0
    %v654 = vadd.f32 0.0, %v653
    %v655 = vpop.f32.mrb[0].mxu0
    %656 = vdwg.mxu0
    %657 = vrot.lane.b32.xlu0 %v305, 96
    %v658 = vpop.permute.xlu0 %657
    %v660 = vsel %vm315, %v305, 0
    %v663 = vsel %vm315, %v658, 0
    %665 = vmatprep.subr.bf16.mxu0 0
    %666 = vmatpush1.bf16.xpose.msra.mxu0 %v663
    %667 = vmatprep.subr.bf16.mxu0 0
    %668 = vmatpush1.bf16.xpose.msra.mxu0 0
    %669 = vmatprep.subr.bf16.mxu0 0
    %670 = vmatpush1.bf16.xpose.msra.mxu0 0
    %671 = vmatprep.subr.bf16.mxu0 0
    %672 = vmatpush1.bf16.xpose.msra.mxu0 0
    %673 = vmatprep.subr.bf16.mxu0 0
    %674 = vmatpush1.bf16.xpose.msra.mxu0 0
    %675 = vmatprep.subr.bf16.mxu0 0
    %676 = vmatpush1.bf16.xpose.msra.mxu0 0
    %677 = vmatprep.subr.bf16.mxu0 0
    %678 = vmatpush1.bf16.xpose.msra.mxu0 0
    %679 = vmatprep.subr.bf16.mxu0 0
    %680 = vmatpush1.bf16.xpose.msra.mxu0 0
    %681 = vmatprep.subr.bf16.mxu0 0
    %682 = vmatpush1.bf16.xpose.msra.mxu0 0
    %683 = vmatprep.subr.bf16.mxu0 0
    %684 = vmatpush1.bf16.xpose.msra.mxu0 0
    %685 = vmatprep.subr.bf16.mxu0 0
    %686 = vmatpush1.bf16.xpose.msra.mxu0 0
    %687 = vmatprep.subr.bf16.mxu0 0
    %688 = vmatpush1.bf16.xpose.msra.mxu0 0
    %689 = vmatprep.subr.bf16.mxu0 0
    %690 = vmatpush1.bf16.xpose.msra.mxu0 0
    %691 = vmatprep.subr.bf16.mxu0 0
    %692 = vmatpush1.bf16.xpose.msra.mxu0 0
    %693 = vmatprep.subr.bf16.mxu0 0
    %694 = vmatpush1.bf16.xpose.msra.mxu0 0
    %695 = vmatprep.subr.bf16.mxu0 0
    %696 = vmatpush1.bf16.xpose.msra.mxu0 0
    %697 = vmatprep.mubr.bf16.mxu0 0
    %698 = vmatmul.mubr.bf16.gmra.mrb[0].mxu0 %v660
    %v699 = vpop.f32.mrb[0].mxu0
    %v700 = vadd.f32 0.0, %v699
    %v701 = vpop.f32.mrb[0].mxu0
    %v702 = vpop.f32.mrb[0].mxu0
    %v703 = vadd.f32 0.0, %v702
    %v704 = vpop.f32.mrb[0].mxu0
    %705 = vdwg.mxu0
    %v706 = vmul.f32 %v357, 0.35355338
    %v707 = vmul.f32 %v360, 0.35355338
    %v708 = vmul.f32 %v406, 0.35355338
    %v709 = vmul.f32 %v409, 0.35355338
    %v710 = vmul.f32 %v455, 0.35355338
    %v711 = vmul.f32 %v458, 0.35355338
    %v712 = vmul.f32 %v504, 0.35355338
    %v713 = vmul.f32 %v507, 0.35355338
    %v714 = vmul.f32 %v553, 0.35355338
    %v715 = vmul.f32 %v556, 0.35355338
    %v716 = vmul.f32 %v602, 0.35355338
    %v717 = vmul.f32 %v605, 0.35355338
    %v718 = vmul.f32 %v651, 0.35355338
    %v719 = vmul.f32 %v654, 0.35355338
    %v720 = vmul.f32 %v700, 0.35355338
    %v721 = vmul.f32 %v703, 0.35355338
    %v722 = vsel %vm311, 1, 0
    %v723 = vsel %vm312, 1, 0
    %vm724 = vcmp.eq.s32.totalorder %v722, 1
    %vm725 = vcmp.eq.s32.totalorder %v723, 1
    %v726 = vsel %vm724, %v706, -1e+30
    %v727 = vsel %vm725, %v707, -1e+30
    %v728 = vsel %vm724, %v708, -1e+30
    %v729 = vsel %vm725, %v709, -1e+30
    %v730 = vsel %vm724, %v710, -1e+30
    %v731 = vsel %vm725, %v711, -1e+30
    %v732 = vsel %vm724, %v712, -1e+30
    %v733 = vsel %vm725, %v713, -1e+30
    %v734 = vsel %vm724, %v714, -1e+30
    %v735 = vsel %vm725, %v715, -1e+30
    %v736 = vsel %vm724, %v716, -1e+30
    %v737 = vsel %vm725, %v717, -1e+30
    %v738 = vsel %vm724, %v718, -1e+30
    %v739 = vsel %vm725, %v719, -1e+30
    %v740 = vsel %vm724, %v720, -1e+30
    %v741 = vsel %vm725, %v721, -1e+30
    %v742 = vsel %vm83, %v726, -inf
    %743 = vmax.xlane.f32.xlu0 %v742
    %v744 = vpop.xlane.xlu0 %743
    %v745 = vsel %vm83, %v727, -inf
    %746 = vmax.xlane.f32.xlu0 %v745
    %v747 = vpop.xlane.xlu0 %746
    %v748 = vsel %vm83, %v728, -inf
    %749 = vmax.xlane.f32.xlu0 %v748
    %v750 = vpop.xlane.xlu0 %749
    %v751 = vsel %vm83, %v729, -inf
    %752 = vmax.xlane.f32.xlu0 %v751
    %v753 = vpop.xlane.xlu0 %752
    %v754 = vsel %vm83, %v730, -inf
    %755 = vmax.xlane.f32.xlu0 %v754
    %v756 = vpop.xlane.xlu0 %755
    %v757 = vsel %vm83, %v731, -inf
    %758 = vmax.xlane.f32.xlu0 %v757
    %v759 = vpop.xlane.xlu0 %758
    %v760 = vsel %vm83, %v732, -inf
    %761 = vmax.xlane.f32.xlu0 %v760
    %v762 = vpop.xlane.xlu0 %761
    %v763 = vsel %vm83, %v733, -inf
    %764 = vmax.xlane.f32.xlu0 %v763
    %v765 = vpop.xlane.xlu0 %764
    %v766 = vsel %vm83, %v734, -inf
    %767 = vmax.xlane.f32.xlu0 %v766
    %v768 = vpop.xlane.xlu0 %767
    %v769 = vsel %vm83, %v735, -inf
    %770 = vmax.xlane.f32.xlu0 %v769
    %v771 = vpop.xlane.xlu0 %770
    %v772 = vsel %vm83, %v736, -inf
    %773 = vmax.xlane.f32.xlu0 %v772
    %v774 = vpop.xlane.xlu0 %773
    %v775 = vsel %vm83, %v737, -inf
    %776 = vmax.xlane.f32.xlu0 %v775
    %v777 = vpop.xlane.xlu0 %776
    %v778 = vsel %vm83, %v738, -inf
    %779 = vmax.xlane.f32.xlu0 %v778
    %v780 = vpop.xlane.xlu0 %779
    %v781 = vsel %vm83, %v739, -inf
    %782 = vmax.xlane.f32.xlu0 %v781
    %v783 = vpop.xlane.xlu0 %782
    %v784 = vsel %vm83, %v740, -inf
    %785 = vmax.xlane.f32.xlu0 %v784
    %v786 = vpop.xlane.xlu0 %785
    %v787 = vsel %vm83, %v741, -inf
    %788 = vmax.xlane.f32.xlu0 %v787
    %v789 = vpop.xlane.xlu0 %788
    %v790 = vsub.f32 %v726, %v744
    %v791 = vsub.f32 %v727, %v747
    %v792 = vsub.f32 %v728, %v750
    %v793 = vsub.f32 %v729, %v753
    %v794 = vsub.f32 %v730, %v756
    %v795 = vsub.f32 %v731, %v759
    %v796 = vsub.f32 %v732, %v762
    %v797 = vsub.f32 %v733, %v765
    %v798 = vsub.f32 %v734, %v768
    %v799 = vsub.f32 %v735, %v771
    %v800 = vsub.f32 %v736, %v774
    %v801 = vsub.f32 %v737, %v777
    %v802 = vsub.f32 %v738, %v780
    %v803 = vsub.f32 %v739, %v783
    %v804 = vsub.f32 %v740, %v786
    %v805 = vsub.f32 %v741, %v789
    %v806 = vmul.f32 %v790, 1.442695
    %v807 = vpow.pop %v806
    %v808 = vmul.f32 %v791, 1.442695
    %v809 = vpow.pop %v808
    %v810 = vmul.f32 %v792, 1.442695
    %v811 = vpow.pop %v810
    %v812 = vmul.f32 %v793, 1.442695
    %v813 = vpow.pop %v812
    %v814 = vmul.f32 %v794, 1.442695
    %v815 = vpow.pop %v814
    %v816 = vmul.f32 %v795, 1.442695
    %v817 = vpow.pop %v816
    %v818 = vmul.f32 %v796, 1.442695
    %v819 = vpow.pop %v818
    %v820 = vmul.f32 %v797, 1.442695
    %v821 = vpow.pop %v820
    %v822 = vmul.f32 %v798, 1.442695
    %v823 = vpow.pop %v822
    %v824 = vmul.f32 %v799, 1.442695
    %v825 = vpow.pop %v824
    %v826 = vmul.f32 %v800, 1.442695
    %v827 = vpow.pop %v826
    %v828 = vmul.f32 %v801, 1.442695
    %v829 = vpow.pop %v828
    %v830 = vmul.f32 %v802, 1.442695
    %v831 = vpow.pop %v830
    %v832 = vmul.f32 %v803, 1.442695
    %v833 = vpow.pop %v832
    %v834 = vmul.f32 %v804, 1.442695
    %v835 = vpow.pop %v834
    %v836 = vmul.f32 %v805, 1.442695
    %v837 = vpow.pop %v836
    %v838 = vsel %vm83, %v807, 0.0
    %839 = vadd.xlane.f32.xlu0 %v838
    %v840 = vpop.xlane.xlu0 %839
    %v841 = vsel %vm83, %v809, 0.0
    %842 = vadd.xlane.f32.xlu0 %v841
    %v843 = vpop.xlane.xlu0 %842
    %v844 = vsel %vm83, %v811, 0.0
    %845 = vadd.xlane.f32.xlu0 %v844
    %v846 = vpop.xlane.xlu0 %845
    %v847 = vsel %vm83, %v813, 0.0
    %848 = vadd.xlane.f32.xlu0 %v847
    %v849 = vpop.xlane.xlu0 %848
    %v850 = vsel %vm83, %v815, 0.0
    %851 = vadd.xlane.f32.xlu0 %v850
    %v852 = vpop.xlane.xlu0 %851
    %v853 = vsel %vm83, %v817, 0.0
    %854 = vadd.xlane.f32.xlu0 %v853
    %v855 = vpop.xlane.xlu0 %854
    %v856 = vsel %vm83, %v819, 0.0
    %857 = vadd.xlane.f32.xlu0 %v856
    %v858 = vpop.xlane.xlu0 %857
    %v859 = vsel %vm83, %v821, 0.0
    %860 = vadd.xlane.f32.xlu0 %v859
    %v861 = vpop.xlane.xlu0 %860
    %v862 = vsel %vm83, %v823, 0.0
    %863 = vadd.xlane.f32.xlu0 %v862
    %v864 = vpop.xlane.xlu0 %863
    %v865 = vsel %vm83, %v825, 0.0
    %866 = vadd.xlane.f32.xlu0 %v865
    %v867 = vpop.xlane.xlu0 %866
    %v868 = vsel %vm83, %v827, 0.0
    %869 = vadd.xlane.f32.xlu0 %v868
    %v870 = vpop.xlane.xlu0 %869
    %v871 = vsel %vm83, %v829, 0.0
    %872 = vadd.xlane.f32.xlu0 %v871
    %v873 = vpop.xlane.xlu0 %872
    %v874 = vsel %vm83, %v831, 0.0
    %875 = vadd.xlane.f32.xlu0 %v874
    %v876 = vpop.xlane.xlu0 %875
    %v877 = vsel %vm83, %v833, 0.0
    %878 = vadd.xlane.f32.xlu0 %v877
    %v879 = vpop.xlane.xlu0 %878
    %v880 = vsel %vm83, %v835, 0.0
    %881 = vadd.xlane.f32.xlu0 %v880
    %v882 = vpop.xlane.xlu0 %881
    %v883 = vsel %vm83, %v837, 0.0
    %884 = vadd.xlane.f32.xlu0 %v883
    %v885 = vpop.xlane.xlu0 %884
    %v886 = vrcp.pop %v840
    %v887 = vrcp.pop %v843
    %v888 = vrcp.pop %v846
    %v889 = vrcp.pop %v849
    %v890 = vrcp.pop %v852
    %v891 = vrcp.pop %v855
    %v892 = vrcp.pop %v858
    %v893 = vrcp.pop %v861
    %v894 = vrcp.pop %v864
    %v895 = vrcp.pop %v867
    %v896 = vrcp.pop %v870
    %v897 = vrcp.pop %v873
    %v898 = vrcp.pop %v876
    %v899 = vrcp.pop %v879
    %v900 = vrcp.pop %v882
    %v901 = vrcp.pop %v885
    %v902 = vmul.f32 %v807, %v886
    %v903 = vmul.f32 %v809, %v887
    %v904 = vmul.f32 %v811, %v888
    %v905 = vmul.f32 %v813, %v889
    %v906 = vmul.f32 %v815, %v890
    %v907 = vmul.f32 %v817, %v891
    %v908 = vmul.f32 %v819, %v892
    %v909 = vmul.f32 %v821, %v893
    %v910 = vmul.f32 %v823, %v894
    %v911 = vmul.f32 %v825, %v895
    %v912 = vmul.f32 %v827, %v896
    %v913 = vmul.f32 %v829, %v897
    %v914 = vmul.f32 %v831, %v898
    %v915 = vmul.f32 %v833, %v899
    %v916 = vmul.f32 %v835, %v900
    %v917 = vmul.f32 %v837, %v901
    %v918 = vpack.c.bf16 %v903, %v902
    %v919 = vpack.c.bf16 %v905, %v904
    %v920 = vpack.c.bf16 %v907, %v906
    %v921 = vpack.c.bf16 %v909, %v908
    %v922 = vpack.c.bf16 %v911, %v910
    %v923 = vpack.c.bf16 %v913, %v912
    %v924 = vpack.c.bf16 %v915, %v914
    %v925 = vpack.c.bf16 %v917, %v916
    %926 = vrot.lane.b32.xlu0 %v290, 64
    %v927 = vpop.permute.xlu0 %926
    %v930 = vsel %vm83, %v918, 0
    %932 = vmatprep.subr.bf16.mxu0 0
    %933 = vmatpush1.bf16.msra.mxu0 %v927
    %934 = vmatprep.subr.bf16.mxu0 0
    %935 = vmatpush1.bf16.msra.mxu0 0
    %936 = vmatprep.subr.bf16.mxu0 0
    %937 = vmatpush1.bf16.msra.mxu0 0
    %938 = vmatprep.subr.bf16.mxu0 0
    %939 = vmatpush1.bf16.msra.mxu0 0
    %940 = vmatprep.subr.bf16.mxu0 0
    %941 = vmatpush1.bf16.msra.mxu0 0
    %942 = vmatprep.subr.bf16.mxu0 0
    %943 = vmatpush1.bf16.msra.mxu0 0
    %944 = vmatprep.subr.bf16.mxu0 0
    %945 = vmatpush1.bf16.msra.mxu0 0
    %946 = vmatprep.subr.bf16.mxu0 0
    %947 = vmatpush1.bf16.msra.mxu0 0
    %948 = vmatprep.subr.bf16.mxu0 0
    %949 = vmatpush1.bf16.msra.mxu0 0
    %950 = vmatprep.subr.bf16.mxu0 0
    %951 = vmatpush1.bf16.msra.mxu0 0
    %952 = vmatprep.subr.bf16.mxu0 0
    %953 = vmatpush1.bf16.msra.mxu0 0
    %954 = vmatprep.subr.bf16.mxu0 0
    %955 = vmatpush1.bf16.msra.mxu0 0
    %956 = vmatprep.subr.bf16.mxu0 0
    %957 = vmatpush1.bf16.msra.mxu0 0
    %958 = vmatprep.subr.bf16.mxu0 0
    %959 = vmatpush1.bf16.msra.mxu0 0
    %960 = vmatprep.subr.bf16.mxu0 0
    %961 = vmatpush1.bf16.msra.mxu0 0
    %962 = vmatprep.subr.bf16.mxu0 0
    %963 = vmatpush1.bf16.msra.mxu0 0
    %964 = vmatprep.mubr.bf16.mxu0 0
    %965 = vmatmul.mubr.bf16.gmra.mrb[0].mxu0 %v930
    %v966 = vpop.f32.mrb[0].mxu0
    %v967 = vadd.f32 0.0, %v966
    %v968 = vpop.f32.mrb[0].mxu0
    %v969 = vpop.f32.mrb[0].mxu0
    %v970 = vadd.f32 0.0, %v969
    %v971 = vpop.f32.mrb[0].mxu0
    %972 = vdwg.mxu0
    %973 = vrot.lane.b32.xlu0 %v291, 64
    %v974 = vpop.permute.xlu0 %973
    %v977 = vsel %vm83, %v919, 0
    %979 = vmatprep.subr.bf16.mxu0 0
    %980 = vmatpush1.bf16.msra.mxu0 %v974
    %981 = vmatprep.subr.bf16.mxu0 0
    %982 = vmatpush1.bf16.msra.mxu0 0
    %983 = vmatprep.subr.bf16.mxu0 0
    %984 = vmatpush1.bf16.msra.mxu0 0
    %985 = vmatprep.subr.bf16.mxu0 0
    %986 = vmatpush1.bf16.msra.mxu0 0
    %987 = vmatprep.subr.bf16.mxu0 0
    %988 = vmatpush1.bf16.msra.mxu0 0
    %989 = vmatprep.subr.bf16.mxu0 0
    %990 = vmatpush1.bf16.msra.mxu0 0
    %991 = vmatprep.subr.bf16.mxu0 0
    %992 = vmatpush1.bf16.msra.mxu0 0
    %993 = vmatprep.subr.bf16.mxu0 0
    %994 = vmatpush1.bf16.msra.mxu0 0
    %995 = vmatprep.subr.bf16.mxu0 0
    %996 = vmatpush1.bf16.msra.mxu0 0
    %997 = vmatprep.subr.bf16.mxu0 0
    %998 = vmatpush1.bf16.msra.mxu0 0
    %999 = vmatprep.subr.bf16.mxu0 0
    %1000 = vmatpush1.bf16.msra.mxu0 0
    %1001 = vmatprep.subr.bf16.mxu0 0
    %1002 = vmatpush1.bf16.msra.mxu0 0
    %1003 = vmatprep.subr.bf16.mxu0 0
    %1004 = vmatpush1.bf16.msra.mxu0 0
    %1005 = vmatprep.subr.bf16.mxu0 0
    %1006 = vmatpush1.bf16.msra.mxu0 0
    %1007 = vmatprep.subr.bf16.mxu0 0
    %1008 = vmatpush1.bf16.msra.mxu0 0
    %1009 = vmatprep.subr.bf16.mxu0 0
    %1010 = vmatpush1.bf16.msra.mxu0 0
    %1011 = vmatprep.mubr.bf16.mxu0 0
    %1012 = vmatmul.mubr.bf16.gmra.mrb[0].mxu0 %v977
    %v1013 = vpop.f32.mrb[0].mxu0
    %v1014 = vadd.f32 0.0, %v1013
    %v1015 = vpop.f32.mrb[0].mxu0
    %v1016 = vpop.f32.mrb[0].mxu0
    %v1017 = vadd.f32 0.0, %v1016
    %v1018 = vpop.f32.mrb[0].mxu0
    %1019 = vdwg.mxu0
    %1020 = vrot.lane.b32.xlu0 %v295, 64
    %v1021 = vpop.permute.xlu0 %1020
    %v1024 = vsel %vm83, %v920, 0
    %1026 = vmatprep.subr.bf16.mxu0 0
    %1027 = vmatpush1.bf16.msra.mxu0 %v1021
    %1028 = vmatprep.subr.bf16.mxu0 0
    %1029 = vmatpush1.bf16.msra.mxu0 0
    %1030 = vmatprep.subr.bf16.mxu0 0
    %1031 = vmatpush1.bf16.msra.mxu0 0
    %1032 = vmatprep.subr.bf16.mxu0 0
    %1033 = vmatpush1.bf16.msra.mxu0 0
    %1034 = vmatprep.subr.bf16.mxu0 0
    %1035 = vmatpush1.bf16.msra.mxu0 0
    %1036 = vmatprep.subr.bf16.mxu0 0
    %1037 = vmatpush1.bf16.msra.mxu0 0
    %1038 = vmatprep.subr.bf16.mxu0 0
    %1039 = vmatpush1.bf16.msra.mxu0 0
    %1040 = vmatprep.subr.bf16.mxu0 0
    %1041 = vmatpush1.bf16.msra.mxu0 0
    %1042 = vmatprep.subr.bf16.mxu0 0
    %1043 = vmatpush1.bf16.msra.mxu0 0
    %1044 = vmatprep.subr.bf16.mxu0 0
    %1045 = vmatpush1.bf16.msra.mxu0 0
    %1046 = vmatprep.subr.bf16.mxu0 0
    %1047 = vmatpush1.bf16.msra.mxu0 0
    %1048 = vmatprep.subr.bf16.mxu0 0
    %1049 = vmatpush1.bf16.msra.mxu0 0
    %1050 = vmatprep.subr.bf16.mxu0 0
    %1051 = vmatpush1.bf16.msra.mxu0 0
    %1052 = vmatprep.subr.bf16.mxu0 0
    %1053 = vmatpush1.bf16.msra.mxu0 0
    %1054 = vmatprep.subr.bf16.mxu0 0
    %1055 = vmatpush1.bf16.msra.mxu0 0
    %1056 = vmatprep.subr.bf16.mxu0 0
    %1057 = vmatpush1.bf16.msra.mxu0 0
    %1058 = vmatprep.mubr.bf16.mxu0 0
    %1059 = vmatmul.mubr.bf16.gmra.mrb[0].mxu0 %v1024
    %v1060 = vpop.f32.mrb[0].mxu0
    %v1061 = vadd.f32 0.0, %v1060
    %v1062 = vpop.f32.mrb[0].mxu0
    %v1063 = vpop.f32.mrb[0].mxu0
    %v1064 = vadd.f32 0.0, %v1063
    %v1065 = vpop.f32.mrb[0].mxu0
    %1066 = vdwg.mxu0
    %1067 = vrot.lane.b32.xlu0 %v297, 64
    %v1068 = vpop.permute.xlu0 %1067
    %v1071 = vsel %vm83, %v921, 0
    %1073 = vmatprep.subr.bf16.mxu0 0
    %1074 = vmatpush1.bf16.msra.mxu0 %v1068
    %1075 = vmatprep.subr.bf16.mxu0 0
    %1076 = vmatpush1.bf16.msra.mxu0 0
    %1077 = vmatprep.subr.bf16.mxu0 0
    %1078 = vmatpush1.bf16.msra.mxu0 0
    %1079 = vmatprep.subr.bf16.mxu0 0
    %1080 = vmatpush1.bf16.msra.mxu0 0
    %1081 = vmatprep.subr.bf16.mxu0 0
    %1082 = vmatpush1.bf16.msra.mxu0 0
    %1083 = vmatprep.subr.bf16.mxu0 0
    %1084 = vmatpush1.bf16.msra.mxu0 0
    %1085 = vmatprep.subr.bf16.mxu0 0
    %1086 = vmatpush1.bf16.msra.mxu0 0
    %1087 = vmatprep.subr.bf16.mxu0 0
    %1088 = vmatpush1.bf16.msra.mxu0 0
    %1089 = vmatprep.subr.bf16.mxu0 0
    %1090 = vmatpush1.bf16.msra.mxu0 0
    %1091 = vmatprep.subr.bf16.mxu0 0
    %1092 = vmatpush1.bf16.msra.mxu0 0
    %1093 = vmatprep.subr.bf16.mxu0 0
    %1094 = vmatpush1.bf16.msra.mxu0 0
    %1095 = vmatprep.subr.bf16.mxu0 0
    %1096 = vmatpush1.bf16.msra.mxu0 0
    %1097 = vmatprep.subr.bf16.mxu0 0
    %1098 = vmatpush1.bf16.msra.mxu0 0
    %1099 = vmatprep.subr.bf16.mxu0 0
    %1100 = vmatpush1.bf16.msra.mxu0 0
    %1101 = vmatprep.subr.bf16.mxu0 0
    %1102 = vmatpush1.bf16.msra.mxu0 0
    %1103 = vmatprep.subr.bf16.mxu0 0
    %1104 = vmatpush1.bf16.msra.mxu0 0
    %1105 = vmatprep.mubr.bf16.mxu0 0
    %1106 = vmatmul.mubr.bf16.gmra.mrb[0].mxu0 %v1071
    %v1107 = vpop.f32.mrb[0].mxu0
    %v1108 = vadd.f32 0.0, %v1107
    %v1109 = vpop.f32.mrb[0].mxu0
    %v1110 = vpop.f32.mrb[0].mxu0
    %v1111 = vadd.f32 0.0, %v1110
    %v1112 = vpop.f32.mrb[0].mxu0
    %1113 = vdwg.mxu0
    %1114 = vrot.lane.b32.xlu0 %v299, 64
    %v1115 = vpop.permute.xlu0 %1114
    %v1118 = vsel %vm83, %v922, 0
    %1120 = vmatprep.subr.bf16.mxu0 0
    %1121 = vmatpush1.bf16.msra.mxu0 %v1115
    %1122 = vmatprep.subr.bf16.mxu0 0
    %1123 = vmatpush1.bf16.msra.mxu0 0
    %1124 = vmatprep.subr.bf16.mxu0 0
    %1125 = vmatpush1.bf16.msra.mxu0 0
    %1126 = vmatprep.subr.bf16.mxu0 0
    %1127 = vmatpush1.bf16.msra.mxu0 0
    %1128 = vmatprep.subr.bf16.mxu0 0
    %1129 = vmatpush1.bf16.msra.mxu0 0
    %1130 = vmatprep.subr.bf16.mxu0 0
    %1131 = vmatpush1.bf16.msra.mxu0 0
    %1132 = vmatprep.subr.bf16.mxu0 0
    %1133 = vmatpush1.bf16.msra.mxu0 0
    %1134 = vmatprep.subr.bf16.mxu0 0
    %1135 = vmatpush1.bf16.msra.mxu0 0
    %1136 = vmatprep.subr.bf16.mxu0 0
    %1137 = vmatpush1.bf16.msra.mxu0 0
    %1138 = vmatprep.subr.bf16.mxu0 0
    %1139 = vmatpush1.bf16.msra.mxu0 0
    %1140 = vmatprep.subr.bf16.mxu0 0
    %1141 = vmatpush1.bf16.msra.mxu0 0
    %1142 = vmatprep.subr.bf16.mxu0 0
    %1143 = vmatpush1.bf16.msra.mxu0 0
    %1144 = vmatprep.subr.bf16.mxu0 0
    %1145 = vmatpush1.bf16.msra.mxu0 0
    %1146 = vmatprep.subr.bf16.mxu0 0
    %1147 = vmatpush1.bf16.msra.mxu0 0
    %1148 = vmatprep.subr.bf16.mxu0 0
    %1149 = vmatpush1.bf16.msra.mxu0 0
    %1150 = vmatprep.subr.bf16.mxu0 0
    %1151 = vmatpush1.bf16.msra.mxu0 0
    %1152 = vmatprep.mubr.bf16.mxu0 0
    %1153 = vmatmul.mubr.bf16.gmra.mrb[0].mxu0 %v1118
    %v1154 = vpop.f32.mrb[0].mxu0
    %v1155 = vadd.f32 0.0, %v1154
    %v1156 = vpop.f32.mrb[0].mxu0
    %v1157 = vpop.f32.mrb[0].mxu0
    %v1158 = vadd.f32 0.0, %v1157
    %v1159 = vpop.f32.mrb[0].mxu0
    %1160 = vdwg.mxu0
    %1161 = vrot.lane.b32.xlu0 %v301, 64
    %v1162 = vpop.permute.xlu0 %1161
    %v1165 = vsel %vm83, %v923, 0
    %1167 = vmatprep.subr.bf16.mxu0 0
    %1168 = vmatpush1.bf16.msra.mxu0 %v1162
    %1169 = vmatprep.subr.bf16.mxu0 0
    %1170 = vmatpush1.bf16.msra.mxu0 0
    %1171 = vmatprep.subr.bf16.mxu0 0
    %1172 = vmatpush1.bf16.msra.mxu0 0
    %1173 = vmatprep.subr.bf16.mxu0 0
    %1174 = vmatpush1.bf16.msra.mxu0 0
    %1175 = vmatprep.subr.bf16.mxu0 0
    %1176 = vmatpush1.bf16.msra.mxu0 0
    %1177 = vmatprep.subr.bf16.mxu0 0
    %1178 = vmatpush1.bf16.msra.mxu0 0
    %1179 = vmatprep.subr.bf16.mxu0 0
    %1180 = vmatpush1.bf16.msra.mxu0 0
    %1181 = vmatprep.subr.bf16.mxu0 0
    %1182 = vmatpush1.bf16.msra.mxu0 0
    %1183 = vmatprep.subr.bf16.mxu0 0
    %1184 = vmatpush1.bf16.msra.mxu0 0
    %1185 = vmatprep.subr.bf16.mxu0 0
    %1186 = vmatpush1.bf16.msra.mxu0 0
    %1187 = vmatprep.subr.bf16.mxu0 0
    %1188 = vmatpush1.bf16.msra.mxu0 0
    %1189 = vmatprep.subr.bf16.mxu0 0
    %1190 = vmatpush1.bf16.msra.mxu0 0
    %1191 = vmatprep.subr.bf16.mxu0 0
    %1192 = vmatpush1.bf16.msra.mxu0 0
    %1193 = vmatprep.subr.bf16.mxu0 0
    %1194 = vmatpush1.bf16.msra.mxu0 0
    %1195 = vmatprep.subr.bf16.mxu0 0
    %1196 = vmatpush1.bf16.msra.mxu0 0
    %1197 = vmatprep.subr.bf16.mxu0 0
    %1198 = vmatpush1.bf16.msra.mxu0 0
    %1199 = vmatprep.mubr.bf16.mxu0 0
    %1200 = vmatmul.mubr.bf16.gmra.mrb[0].mxu0 %v1165
    %v1201 = vpop.f32.mrb[0].mxu0
    %v1202 = vadd.f32 0.0, %v1201
    %v1203 = vpop.f32.mrb[0].mxu0
    %v1204 = vpop.f32.mrb[0].mxu0
    %v1205 = vadd.f32 0.0, %v1204
    %v1206 = vpop.f32.mrb[0].mxu0
    %1207 = vdwg.mxu0
    %1208 = vrot.lane.b32.xlu0 %v303, 64
    %v1209 = vpop.permute.xlu0 %1208
    %v1212 = vsel %vm83, %v924, 0
    %1214 = vmatprep.subr.bf16.mxu0 0
    %1215 = vmatpush1.bf16.msra.mxu0 %v1209
    %1216 = vmatprep.subr.bf16.mxu0 0
    %1217 = vmatpush1.bf16.msra.mxu0 0
    %1218 = vmatprep.subr.bf16.mxu0 0
    %1219 = vmatpush1.bf16.msra.mxu0 0
    %1220 = vmatprep.subr.bf16.mxu0 0
    %1221 = vmatpush1.bf16.msra.mxu0 0
    %1222 = vmatprep.subr.bf16.mxu0 0
    %1223 = vmatpush1.bf16.msra.mxu0 0
    %1224 = vmatprep.subr.bf16.mxu0 0
    %1225 = vmatpush1.bf16.msra.mxu0 0
    %1226 = vmatprep.subr.bf16.mxu0 0
    %1227 = vmatpush1.bf16.msra.mxu0 0
    %1228 = vmatprep.subr.bf16.mxu0 0
    %1229 = vmatpush1.bf16.msra.mxu0 0
    %1230 = vmatprep.subr.bf16.mxu0 0
    %1231 = vmatpush1.bf16.msra.mxu0 0
    %1232 = vmatprep.subr.bf16.mxu0 0
    %1233 = vmatpush1.bf16.msra.mxu0 0
    %1234 = vmatprep.subr.bf16.mxu0 0
    %1235 = vmatpush1.bf16.msra.mxu0 0
    %1236 = vmatprep.subr.bf16.mxu0 0
    %1237 = vmatpush1.bf16.msra.mxu0 0
    %1238 = vmatprep.subr.bf16.mxu0 0
    %1239 = vmatpush1.bf16.msra.mxu0 0
    %1240 = vmatprep.subr.bf16.mxu0 0
    %1241 = vmatpush1.bf16.msra.mxu0 0
    %1242 = vmatprep.subr.bf16.mxu0 0
    %1243 = vmatpush1.bf16.msra.mxu0 0
    %1244 = vmatprep.subr.bf16.mxu0 0
    %1245 = vmatpush1.bf16.msra.mxu0 0
    %1246 = vmatprep.mubr.bf16.mxu0 0
    %1247 = vmatmul.mubr.bf16.gmra.mrb[0].mxu0 %v1212
    %v1248 = vpop.f32.mrb[0].mxu0
    %v1249 = vadd.f32 0.0, %v1248
    %v1250 = vpop.f32.mrb[0].mxu0
    %v1251 = vpop.f32.mrb[0].mxu0
    %v1252 = vadd.f32 0.0, %v1251
    %v1253 = vpop.f32.mrb[0].mxu0
    %1254 = vdwg.mxu0
    %1255 = vrot.lane.b32.xlu0 %v305, 64
    %v1256 = vpop.permute.xlu0 %1255
    %v1259 = vsel %vm83, %v925, 0
    %1261 = vmatprep.subr.bf16.mxu0 0
    %1262 = vmatpush1.bf16.msra.mxu0 %v1256
    %1263 = vmatprep.subr.bf16.mxu0 0
    %1264 = vmatpush1.bf16.msra.mxu0 0
    %1265 = vmatprep.subr.bf16.mxu0 0
    %1266 = vmatpush1.bf16.msra.mxu0 0
    %1267 = vmatprep.subr.bf16.mxu0 0
    %1268 = vmatpush1.bf16.msra.mxu0 0
    %1269 = vmatprep.subr.bf16.mxu0 0
    %1270 = vmatpush1.bf16.msra.mxu0 0
    %1271 = vmatprep.subr.bf16.mxu0 0
    %1272 = vmatpush1.bf16.msra.mxu0 0
    %1273 = vmatprep.subr.bf16.mxu0 0
    %1274 = vmatpush1.bf16.msra.mxu0 0
    %1275 = vmatprep.subr.bf16.mxu0 0
    %1276 = vmatpush1.bf16.msra.mxu0 0
    %1277 = vmatprep.subr.bf16.mxu0 0
    %1278 = vmatpush1.bf16.msra.mxu0 0
    %1279 = vmatprep.subr.bf16.mxu0 0
    %1280 = vmatpush1.bf16.msra.mxu0 0
    %1281 = vmatprep.subr.bf16.mxu0 0
    %1282 = vmatpush1.bf16.msra.mxu0 0
    %1283 = vmatprep.subr.bf16.mxu0 0
    %1284 = vmatpush1.bf16.msra.mxu0 0
    %1285 = vmatprep.subr.bf16.mxu0 0
    %1286 = vmatpush1.bf16.msra.mxu0 0
    %1287 = vmatprep.subr.bf16.mxu0 0
    %1288 = vmatpush1.bf16.msra.mxu0 0
    %1289 = vmatprep.subr.bf16.mxu0 0
    %1290 = vmatpush1.bf16.msra.mxu0 0
    %1291 = vmatprep.subr.bf16.mxu0 0
    %1292 = vmatpush1.bf16.msra.mxu0 0
    %1293 = vmatprep.mubr.bf16.mxu0 0
    %1294 = vmatmul.mubr.bf16.gmra.mrb[0].mxu0 %v1259
    %v1295 = vpop.f32.mrb[0].mxu0
    %v1296 = vadd.f32 0.0, %v1295
    %v1297 = vpop.f32.mrb[0].mxu0
    %v1298 = vpop.f32.mrb[0].mxu0
    %v1299 = vadd.f32 0.0, %v1298
    %v1300 = vpop.f32.mrb[0].mxu0
    %1301 = vdwg.mxu0
    %1306 = vrot.lane.b32.xlu0 %v1061, 8
    %v1307 = vpop.permute.xlu0 %1306
    %1308 = vrot.lane.b32.xlu0 %v1064, 8
    %v1309 = vpop.permute.xlu0 %1308
    %1310 = vrot.lane.b32.xlu0 %v1108, 8
    %v1311 = vpop.permute.xlu0 %1310
    %1312 = vrot.lane.b32.xlu0 %v1111, 8
    %v1313 = vpop.permute.xlu0 %1312
    %1322 = vrot.lane.b32.xlu0 %v1155, 16
    %v1323 = vpop.permute.xlu0 %1322
    %1324 = vrot.lane.b32.xlu0 %v1158, 16
    %v1325 = vpop.permute.xlu0 %1324
    %1326 = vrot.lane.b32.xlu0 %v1202, 16
    %v1327 = vpop.permute.xlu0 %1326
    %1328 = vrot.lane.b32.xlu0 %v1205, 16
    %v1329 = vpop.permute.xlu0 %1328
    %1338 = vrot.lane.b32.xlu0 %v1249, 24
    %v1339 = vpop.permute.xlu0 %1338
    %1340 = vrot.lane.b32.xlu0 %v1252, 24
    %v1341 = vpop.permute.xlu0 %1340
    %1342 = vrot.lane.b32.xlu0 %v1296, 24
    %v1343 = vpop.permute.xlu0 %1342
    %1344 = vrot.lane.b32.xlu0 %v1299, 24
    %v1345 = vpop.permute.xlu0 %1344
    %v1350 = vsel %vm315, %v967, %v1307
    %v1351 = vsel %vm315, %v970, %v1309
    %v1352 = vsel %vm315, %v1014, %v1311
    %v1353 = vsel %vm315, %v1017, %v1313
    %v1354 = vsel %vm83, %v1350, %v1323
    %v1355 = vsel %vm83, %v1351, %v1325
    %v1356 = vsel %vm83, %v1352, %v1327
    %v1357 = vsel %vm83, %v1353, %v1329
    %vm1358 = vcmask 195584
    %v1359 = vsel %vm1358, %v1354, %v1339
    %v1360 = vsel %vm1358, %v1355, %v1341
    %v1361 = vsel %vm1358, %v1356, %v1343
    %v1362 = vsel %vm1358, %v1357, %v1345
    %v1363 = vpack.c.bf16 %v1360, %v1359
    %v1364 = vpack.c.bf16 %v1362, %v1361
    %1365 = vrot.lane.b32.xlu0 %v231, 32
    %v1366 = vpop.permute.xlu0 %1365
    %1367 = vrot.lane.b32.xlu0 %v232, 32
    %v1368 = vpop.permute.xlu0 %1367
    %v1372 = vsel %vm147, %v1363, 0
    %v1375 = vsel %vm147, %v1364, 0
    %1377 = vmatprep.subr.bf16.mxu0 0
    %1378 = vmatpush1.bf16.msra.mxu0 %v1366
    %1379 = vmatprep.subr.bf16.mxu0 0
    %1380 = vmatpush1.bf16.msra.mxu0 %v1368
    %1381 = vmatprep.subr.bf16.mxu0 0
    %1382 = vmatpush1.bf16.msra.mxu0 0
    %1383 = vmatprep.subr.bf16.mxu0 0
    %1384 = vmatpush1.bf16.msra.mxu0 0
    %1385 = vmatprep.subr.bf16.mxu0 0
    %1386 = vmatpush1.bf16.msra.mxu0 0
    %1387 = vmatprep.subr.bf16.mxu0 0
    %1388 = vmatpush1.bf16.msra.mxu0 0
    %1389 = vmatprep.subr.bf16.mxu0 0
    %1390 = vmatpush1.bf16.msra.mxu0 0
    %1391 = vmatprep.subr.bf16.mxu0 0
    %1392 = vmatpush1.bf16.msra.mxu0 0
    %1393 = vmatprep.subr.bf16.mxu0 0
    %1394 = vmatpush1.bf16.msra.mxu0 0
    %1395 = vmatprep.subr.bf16.mxu0 0
    %1396 = vmatpush1.bf16.msra.mxu0 0
    %1397 = vmatprep.subr.bf16.mxu0 0
    %1398 = vmatpush1.bf16.msra.mxu0 0
    %1399 = vmatprep.subr.bf16.mxu0 0
    %1400 = vmatpush1.bf16.msra.mxu0 0
    %1401 = vmatprep.subr.bf16.mxu0 0
    %1402 = vmatpush1.bf16.msra.mxu0 0
    %1403 = vmatprep.subr.bf16.mxu0 0
    %1404 = vmatpush1.bf16.msra.mxu0 0
    %1405 = vmatprep.subr.bf16.mxu0 0
    %1406 = vmatpush1.bf16.msra.mxu0 0
    %1407 = vmatprep.subr.bf16.mxu0 0
    %1408 = vmatpush1.bf16.msra.mxu0 0
    %1409 = vmatprep.mubr.bf16.mxu0 0
    %1410 = vmatmul.mubr.bf16.gmra.mrb[0].mxu0 %v1372
    %v1411 = vpop.f32.mrb[0].mxu0
    %v1412 = vadd.f32 0.0, %v1411
    %v1413 = vpop.f32.mrb[0].mxu0
    %v1414 = vpop.f32.mrb[0].mxu0
    %v1415 = vadd.f32 0.0, %v1414
    %v1416 = vpop.f32.mrb[0].mxu0
    %1417 = vmatprep.mubr.bf16.mxu0 0
    %1418 = vmatmul.mubr.bf16.gmra.mrb[0].mxu0 %v1375
    %v1419 = vpop.f32.mrb[0].mxu0
    %v1420 = vadd.f32 0.0, %v1419
    %v1421 = vpop.f32.mrb[0].mxu0
    %v1422 = vpop.f32.mrb[0].mxu0
    %v1423 = vadd.f32 0.0, %v1422
    %v1424 = vpop.f32.mrb[0].mxu0
    %1425 = vdwg.mxu0
    %v1426 = vadd.f32 %v143, %v1412
    %v1427 = vadd.f32 %v144, %v1415
    %v1428 = vadd.f32 %v145, %v1420
    %v1429 = vadd.f32 %v146, %v1423
    %v1430 = vlaneseq
    %v1431 = vshrl.u32 %v1430, 7
    %v1432 = vsub.s32 0, %v1431
    %v1433 = vrot.slane %v32, %v1432
    %v1434 = vadd.f32 %v1426, %v1433
    %v1435 = vadd.f32 %v1427, %v1433
    %v1436 = vadd.f32 %v1428, %v1433
    %v1437 = vadd.f32 %v1429, %v1433
    %v1438 = vsel %vm147, %v1434, 0.0
    %1439 = vadd.xlane.f32.xlu0 %v1438
    %v1440 = vpop.xlane.xlu0 %1439
    %v1441 = vsel %vm147, %v1435, 0.0
    %1442 = vadd.xlane.f32.xlu0 %v1441
    %v1443 = vpop.xlane.xlu0 %1442
    %v1444 = vsel %vm147, %v1436, 0.0
    %1445 = vadd.xlane.f32.xlu0 %v1444
    %v1446 = vpop.xlane.xlu0 %1445
    %v1447 = vsel %vm147, %v1437, 0.0
    %1448 = vadd.xlane.f32.xlu0 %v1447
    %v1449 = vpop.xlane.xlu0 %1448
    %v1450 = vmul.f32 %v1440, %v160
    %v1451 = vmul.f32 %v1443, %v160
    %v1452 = vmul.f32 %v1446, %v160
    %v1453 = vmul.f32 %v1449, %v160
    %v1454 = vsub.f32 %v1434, %v1450
    %v1455 = vsub.f32 %v1435, %v1451
    %v1456 = vsub.f32 %v1436, %v1452
    %v1457 = vsub.f32 %v1437, %v1453
    %v1458 = vmul.f32 %v1454, %v1454
    %v1459 = vmul.f32 %v1455, %v1455
    %v1460 = vmul.f32 %v1456, %v1456
    %v1461 = vmul.f32 %v1457, %v1457
    %v1462 = vsel %vm147, %v1458, 0.0
    %1463 = vadd.xlane.f32.xlu0 %v1462
    %v1464 = vpop.xlane.xlu0 %1463
    %v1465 = vsel %vm147, %v1459, 0.0
    %1466 = vadd.xlane.f32.xlu0 %v1465
    %v1467 = vpop.xlane.xlu0 %1466
    %v1468 = vsel %vm147, %v1460, 0.0
    %1469 = vadd.xlane.f32.xlu0 %v1468
    %v1470 = vpop.xlane.xlu0 %1469
    %v1471 = vsel %vm147, %v1461, 0.0
    %1472 = vadd.xlane.f32.xlu0 %v1471
    %v1473 = vpop.xlane.xlu0 %1472
    %v1474 = vmul.f32 %v1464, %v160
    %v1475 = vmul.f32 %v1467, %v160
    %v1476 = vmul.f32 %v1470, %v160
    %v1477 = vmul.f32 %v1473, %v160
    %v1478 = vadd.f32 %v1474, 1e-05
    %v1479 = vadd.f32 %v1475, 1e-05
    %v1480 = vadd.f32 %v1476, 1e-05
    %v1481 = vadd.f32 %v1477, 1e-05
    %v1482 = vrsqrt.pop %v1478
    %v1483 = vrsqrt.pop %v1479
    %v1484 = vrsqrt.pop %v1480
    %v1485 = vrsqrt.pop %v1481
    %v1486 = vmul.f32 %v1454, %v1482
    %v1487 = vmul.f32 %v1455, %v1483
    %v1488 = vmul.f32 %v1456, %v1484
    %v1489 = vmul.f32 %v1457, %v1485
    %v1490 = vlaneseq
    %v1491 = vshrl.u32 %v1490, 7
    %v1492 = vsub.s32 0, %v1491
    %v1493 = vrot.slane %v33, %v1492
    %v1494 = vmul.f32 %v1486, %v1493
    %v1495 = vmul.f32 %v1487, %v1493
    %v1496 = vmul.f32 %v1488, %v1493
    %v1497 = vmul.f32 %v1489, %v1493
    %v1498 = vlaneseq
    %v1499 = vshrl.u32 %v1498, 7
    %v1500 = vsub.s32 0, %v1499
    %v1501 = vrot.slane %v34, %v1500
    %v1502 = vadd.f32 %v1494, %v1501
    %v1503 = vadd.f32 %v1495, %v1501
    %v1504 = vadd.f32 %v1496, %v1501
    %v1505 = vadd.f32 %v1497, %v1501
    %v1506 = vpack.c.bf16 %v1503, %v1502
    %v1507 = vpack.c.bf16 %v1505, %v1504
    %v1508 = vlaneseq
    %v1509 = vshrl.u32 %v1508, 7
    %v1510 = vsub.s32 0, %v1509
    %v1511 = vrot.slane %v40, %v1510
    %v1516 = vunpack.c.l.b16 %v63
    %v1517 = vunpack.c.l.b16 %v64
    %v1518 = vunpack.c.l.b16 %v65
    %v1519 = vunpack.c.l.b16 %v66
    %v1520 = vpack.c.b16 %v1517, %v1516
    %v1521 = vpack.c.b16 %v1519, %v1518
    %v1525 = vsel %vm147, %v1506, 0
    %v1528 = vsel %vm147, %v1507, 0
    %1530 = vmatprep.subr.bf16.mxu0 0
    %1531 = vmatpush1.bf16.msra.mxu0 %v1520
    %1532 = vmatprep.subr.bf16.mxu0 0
    %1533 = vmatpush1.bf16.msra.mxu0 %v1521
    %1534 = vmatprep.subr.bf16.mxu0 0
    %1535 = vmatpush1.bf16.msra.mxu0 0
    %1536 = vmatprep.subr.bf16.mxu0 0
    %1537 = vmatpush1.bf16.msra.mxu0 0
    %1538 = vmatprep.subr.bf16.mxu0 0
    %1539 = vmatpush1.bf16.msra.mxu0 0
    %1540 = vmatprep.subr.bf16.mxu0 0
    %1541 = vmatpush1.bf16.msra.mxu0 0
    %1542 = vmatprep.subr.bf16.mxu0 0
    %1543 = vmatpush1.bf16.msra.mxu0 0
    %1544 = vmatprep.subr.bf16.mxu0 0
    %1545 = vmatpush1.bf16.msra.mxu0 0
    %1546 = vmatprep.subr.bf16.mxu0 0
    %1547 = vmatpush1.bf16.msra.mxu0 0
    %1548 = vmatprep.subr.bf16.mxu0 0
    %1549 = vmatpush1.bf16.msra.mxu0 0
    %1550 = vmatprep.subr.bf16.mxu0 0
    %1551 = vmatpush1.bf16.msra.mxu0 0
    %1552 = vmatprep.subr.bf16.mxu0 0
    %1553 = vmatpush1.bf16.msra.mxu0 0
    %1554 = vmatprep.subr.bf16.mxu0 0
    %1555 = vmatpush1.bf16.msra.mxu0 0
    %1556 = vmatprep.subr.bf16.mxu0 0
    %1557 = vmatpush1.bf16.msra.mxu0 0
    %1558 = vmatprep.subr.bf16.mxu0 0
    %1559 = vmatpush1.bf16.msra.mxu0 0
    %1560 = vmatprep.subr.bf16.mxu0 0
    %1561 = vmatpush1.bf16.msra.mxu0 0
    %1562 = vmatprep.mubr.bf16.mxu0 0
    %1563 = vmatmul.mubr.bf16.gmra.mrb[0].mxu0 %v1525
    %v1564 = vpop.f32.mrb[0].mxu0
    %v1565 = vadd.f32 %v1511, %v1564
    %v1566 = vpop.f32.mrb[0].mxu0
    %v1567 = vpop.f32.mrb[0].mxu0
    %v1568 = vadd.f32 %v1511, %v1567
    %v1569 = vpop.f32.mrb[0].mxu0
    %1570 = vmatprep.mubr.bf16.mxu0 0
    %1571 = vmatmul.mubr.bf16.gmra.mrb[0].mxu0 %v1528
    %v1572 = vpop.f32.mrb[0].mxu0
    %v1573 = vadd.f32 %v1511, %v1572
    %v1574 = vpop.f32.mrb[0].mxu0
    %v1575 = vpop.f32.mrb[0].mxu0
    %v1576 = vadd.f32 %v1511, %v1575
    %v1577 = vpop.f32.mrb[0].mxu0
    %1578 = vdwg.mxu0
    %v1579 = vmul.f32 %v1565, 0.5
    %v1580 = vmul.f32 %v1568, 0.5
    %v1581 = vmul.f32 %v1573, 0.5
    %v1582 = vmul.f32 %v1576, 0.5
    %v1583 = vmul.f32 %v1565, %v1565
    %v1584 = vmul.f32 %v1568, %v1568
    %v1585 = vmul.f32 %v1573, %v1573
    %v1586 = vmul.f32 %v1576, %v1576
    %v1587 = vmul.f32 %v1583, %v1565
    %v1588 = vmul.f32 %v1584, %v1568
    %v1589 = vmul.f32 %v1585, %v1573
    %v1590 = vmul.f32 %v1586, %v1576
    %v1591 = vmul.f32 %v1587, 0.044715
    %v1592 = vmul.f32 %v1588, 0.044715
    %v1593 = vmul.f32 %v1589, 0.044715
    %v1594 = vmul.f32 %v1590, 0.044715
    %v1595 = vadd.f32 %v1565, %v1591
    %v1596 = vadd.f32 %v1568, %v1592
    %v1597 = vadd.f32 %v1573, %v1593
    %v1598 = vadd.f32 %v1576, %v1594
    %v1599 = vmul.f32 %v1595, 0.7978846
    %v1600 = vmul.f32 %v1596, 0.7978846
    %v1601 = vmul.f32 %v1597, 0.7978846
    %v1602 = vmul.f32 %v1598, 0.7978846
    %v1603 = vtanh.pop %v1599
    %v1604 = vtanh.pop %v1600
    %v1605 = vtanh.pop %v1601
    %v1606 = vtanh.pop %v1602
    %v1607 = vadd.f32 %v1603, 1.0
    %v1608 = vadd.f32 %v1604, 1.0
    %v1609 = vadd.f32 %v1605, 1.0
    %v1610 = vadd.f32 %v1606, 1.0
    %v1611 = vmul.f32 %v1579, %v1607
    %v1612 = vmul.f32 %v1580, %v1608
    %v1613 = vmul.f32 %v1581, %v1609
    %v1614 = vmul.f32 %v1582, %v1610
    %v1615 = vpack.c.bf16 %v1612, %v1611
    %v1616 = vpack.c.bf16 %v1614, %v1613
    %v1617 = vlaneseq
    %v1618 = vshrl.u32 %v1617, 7
    %v1619 = vsub.s32 0, %v1618
    %v1620 = vrot.slane %v35, %v1619
    %v1637 = vunpack.c.l.b16 %v43
    %v1638 = vunpack.c.l.b16 %v44
    %v1639 = vunpack.c.l.b16 %v45
    %v1640 = vunpack.c.l.b16 %v46
    %v1641 = vunpack.c.l.b16 %v47
    %v1642 = vunpack.c.l.b16 %v48
    %v1643 = vunpack.c.l.b16 %v49
    %v1644 = vunpack.c.l.b16 %v50
    %v1645 = vunpack.c.l.b16 %v51
    %v1646 = vunpack.c.l.b16 %v52
    %v1647 = vunpack.c.l.b16 %v53
    %v1648 = vunpack.c.l.b16 %v54
    %v1649 = vunpack.c.l.b16 %v55
    %v1650 = vunpack.c.l.b16 %v56
    %v1651 = vunpack.c.l.b16 %v57
    %v1652 = vunpack.c.l.b16 %v58
    %v1653 = vpack.c.b16 %v1638, %v1637
    %v1654 = vpack.c.b16 %v1640, %v1639
    %v1655 = vpack.c.b16 %v1642, %v1641
    %v1656 = vpack.c.b16 %v1644, %v1643
    %v1657 = vpack.c.b16 %v1646, %v1645
    %v1658 = vpack.c.b16 %v1648, %v1647
    %v1659 = vpack.c.b16 %v1650, %v1649
    %v1660 = vpack.c.b16 %v1652, %v1651
    %1669 = vmatprep.subr.bf16.mxu0 0
    %1670 = vmatpush1.bf16.msra.mxu0 %v1653
    %1671 = vmatprep.subr.bf16.mxu0 0
    %1672 = vmatpush1.bf16.msra.mxu0 %v1654
    %1673 = vmatprep.subr.bf16.mxu0 0
    %1674 = vmatpush1.bf16.msra.mxu0 %v1655
    %1675 = vmatprep.subr.bf16.mxu0 0
    %1676 = vmatpush1.bf16.msra.mxu0 %v1656
    %1677 = vmatprep.subr.bf16.mxu0 0
    %1678 = vmatpush1.bf16.msra.mxu0 %v1657
    %1679 = vmatprep.subr.bf16.mxu0 0
    %1680 = vmatpush1.bf16.msra.mxu0 %v1658
    %1681 = vmatprep.subr.bf16.mxu0 0
    %1682 = vmatpush1.bf16.msra.mxu0 %v1659
    %1683 = vmatprep.subr.bf16.mxu0 0
    %1684 = vmatpush1.bf16.msra.mxu0 %v1660
    %1685 = vmatprep.subr.bf16.mxu0 0
    %1686 = vmatpush1.bf16.msra.mxu0 0
    %1687 = vmatprep.subr.bf16.mxu0 0
    %1688 = vmatpush1.bf16.msra.mxu0 0
    %1689 = vmatprep.subr.bf16.mxu0 0
    %1690 = vmatpush1.bf16.msra.mxu0 0
    %1691 = vmatprep.subr.bf16.mxu0 0
    %1692 = vmatpush1.bf16.msra.mxu0 0
    %1693 = vmatprep.subr.bf16.mxu0 0
    %1694 = vmatpush1.bf16.msra.mxu0 0
    %1695 = vmatprep.subr.bf16.mxu0 0
    %1696 = vmatpush1.bf16.msra.mxu0 0
    %1697 = vmatprep.subr.bf16.mxu0 0
    %1698 = vmatpush1.bf16.msra.mxu0 0
    %1699 = vmatprep.subr.bf16.mxu0 0
    %1700 = vmatpush1.bf16.msra.mxu0 0
    %1701 = vmatprep.mubr.bf16.mxu0 0
    %1702 = vmatmul.mubr.bf16.gmra.mrb[0].mxu0 %v1615
    %v1703 = vpop.f32.mrb[0].mxu0
    %v1704 = vadd.f32 %v1620, %v1703
    %v1705 = vpop.f32.mrb[0].mxu0
    %v1706 = vpop.f32.mrb[0].mxu0
    %v1707 = vadd.f32 %v1620, %v1706
    %v1708 = vpop.f32.mrb[0].mxu0
    %1709 = vmatprep.mubr.bf16.mxu0 0
    %1710 = vmatmul.mubr.bf16.gmra.mrb[0].mxu0 %v1616
    %v1711 = vpop.f32.mrb[0].mxu0
    %v1712 = vadd.f32 %v1620, %v1711
    %v1713 = vpop.f32.mrb[0].mxu0
    %v1714 = vpop.f32.mrb[0].mxu0
    %v1715 = vadd.f32 %v1620, %v1714
    %v1716 = vpop.f32.mrb[0].mxu0
    %1717 = vdwg.mxu0
    %v1718 = vadd.f32 %v1434, %v1704
    %v1719 = vadd.f32 %v1435, %v1707
    %v1720 = vadd.f32 %v1436, %v1712
    %v1721 = vadd.f32 %v1437, %v1715
    %v1722 = vsel %vm147, %v1718, 0.0
    %1723 = vadd.xlane.f32.xlu0 %v1722
    %v1724 = vpop.xlane.xlu0 %1723
    %v1725 = vsel %vm147, %v1719, 0.0
    %1726 = vadd.xlane.f32.xlu0 %v1725
    %v1727 = vpop.xlane.xlu0 %1726
    %v1728 = vsel %vm147, %v1720, 0.0
    %1729 = vadd.xlane.f32.xlu0 %v1728
    %v1730 = vpop.xlane.xlu0 %1729
    %v1731 = vsel %vm147, %v1721, 0.0
    %1732 = vadd.xlane.f32.xlu0 %v1731
    %v1733 = vpop.xlane.xlu0 %1732
    %v1734 = vmul.f32 %v1724, %v160
    %v1735 = vmul.f32 %v1727, %v160
    %v1736 = vmul.f32 %v1730, %v160
    %v1737 = vmul.f32 %v1733, %v160
    %v1738 = vsub.f32 %v1718, %v1734
    %v1739 = vsub.f32 %v1719, %v1735
    %v1740 = vsub.f32 %v1720, %v1736
    %v1741 = vsub.f32 %v1721, %v1737
    %v1742 = vmul.f32 %v1738, %v1738
    %v1743 = vmul.f32 %v1739, %v1739
    %v1744 = vmul.f32 %v1740, %v1740
    %v1745 = vmul.f32 %v1741, %v1741
    %v1746 = vsel %vm147, %v1742, 0.0
    %1747 = vadd.xlane.f32.xlu0 %v1746
    %v1748 = vpop.xlane.xlu0 %1747
    %v1749 = vsel %vm147, %v1743, 0.0
    %1750 = vadd.xlane.f32.xlu0 %v1749
    %v1751 = vpop.xlane.xlu0 %1750
    %v1752 = vsel %vm147, %v1744, 0.0
    %1753 = vadd.xlane.f32.xlu0 %v1752
    %v1754 = vpop.xlane.xlu0 %1753
    %v1755 = vsel %vm147, %v1745, 0.0
    %1756 = vadd.xlane.f32.xlu0 %v1755
    %v1757 = vpop.xlane.xlu0 %1756
    %v1758 = vmul.f32 %v1748, %v160
    %v1759 = vmul.f32 %v1751, %v160
    %v1760 = vmul.f32 %v1754, %v160
    %v1761 = vmul.f32 %v1757, %v160
    %v1762 = vadd.f32 %v1758, 1e-05
    %v1763 = vadd.f32 %v1759, 1e-05
    %v1764 = vadd.f32 %v1760, 1e-05
    %v1765 = vadd.f32 %v1761, 1e-05
    %v1766 = vrsqrt.pop %v1762
    %v1767 = vrsqrt.pop %v1763
    %v1768 = vrsqrt.pop %v1764
    %v1769 = vrsqrt.pop %v1765
    %v1770 = vmul.f32 %v1738, %v1766
    %v1771 = vmul.f32 %v1739, %v1767
    %v1772 = vmul.f32 %v1740, %v1768
    %v1773 = vmul.f32 %v1741, %v1769
    %v1774 = vlaneseq
    %v1775 = vshrl.u32 %v1774, 7
    %v1776 = vsub.s32 0, %v1775
    %v1777 = vrot.slane %v36, %v1776
    %v1778 = vmul.f32 %v1770, %v1777
    %v1779 = vmul.f32 %v1771, %v1777
    %v1780 = vmul.f32 %v1772, %v1777
    %v1781 = vmul.f32 %v1773, %v1777
    %v1782 = vlaneseq
    %v1783 = vshrl.u32 %v1782, 7
    %v1784 = vsub.s32 0, %v1783
    %v1785 = vrot.slane %v37, %v1784
    %v1786 = vadd.f32 %v1778, %v1785
    %v1787 = vadd.f32 %v1779, %v1785
    %v1788 = vadd.f32 %v1780, %v1785
    %v1789 = vadd.f32 %v1781, %v1785
    %v1790 = vlaneseq
    %v1791 = vshrl.u32 %v1790, 7
    %v1792 = vsub.s32 0, %v1791
    %v1793 = vrot.slane %v38, %v1792
    %v1794 = vmul.f32 %v1786, %v1793
    %v1795 = vmul.f32 %v1787, %v1793
    %v1796 = vmul.f32 %v1788, %v1793
    %v1797 = vmul.f32 %v1789, %v1793
    %v1798 = vsel %vm147, %v1794, 0.0
    %1799 = vadd.xlane.f32.xlu0 %v1798
    %v1800 = vpop.xlane.xlu0 %1799
    %v1801 = vsel %vm147, %v1795, 0.0
    %1802 = vadd.xlane.f32.xlu0 %v1801
    %v1803 = vpop.xlane.xlu0 %1802
    %v1804 = vsel %vm147, %v1796, 0.0
    %1805 = vadd.xlane.f32.xlu0 %v1804
    %v1806 = vpop.xlane.xlu0 %1805
    %v1807 = vsel %vm147, %v1797, 0.0
    %1808 = vadd.xlane.f32.xlu0 %v1807
    %v1809 = vpop.xlane.xlu0 %1808
    %s1810 = sld [smem:[#allocation2]]
    %v1811 = vstv %s1810
    %v1812 = vadd.f32 %v1800, %v1811
    %v1813 = vadd.f32 %v1803, %v1811
    %v1814 = vadd.f32 %v1806, %v1811
    %v1815 = vadd.f32 %v1809, %v1811
    %v1820 = vlaneseq
    %v1821 = vshrl.u32 %v1820, 7
    %v1822 = vsub.s32 %v310, %v1821
    %v1823 = vrot.slane %v1812, %v1822
    %v1824 = vadd.s32 %v310, 4294967288
    %v1825 = vlaneseq
    %v1826 = vshrl.u32 %v1825, 7
    %v1827 = vsub.s32 %v1824, %v1826
    %v1828 = vrot.slane %v1813, %v1827
    %vm1829 = vcmask 130112
    %v1830 = vsel %vm1829, %v1828, %v1823
    %v1831 = vlaneseq
    %v1832 = vshrl.u32 %v1831, 7
    %v1833 = vsub.s32 %v310, %v1832
    %v1834 = vrot.slane %v1814, %v1833
    %v1835 = vlaneseq
    %v1836 = vshrl.u32 %v1835, 7
    %v1837 = vsub.s32 %v1824, %v1836
    %v1838 = vrot.slane %v1815, %v1837
    %v1839 = vsel %vm1829, %v1838, %v1834
    %vm1840 = vcmask 1041409
    %v1841 = vsel %vm1840, %v1839, %v1830
    %vm1843 = vcmask 123904
    %1844 = vst.msk [vmem:[#allocation3] sm:$0x3] %vm1843, %v1841
    // Predicated region
    $region30: #{tpu_custom_call.1} parent=1 // pred_check
      _
    $region31: #{tpu_custom_call.1} parent=1 // pred_check_branch
      %1846 = sbr.rel (0) target = $region33
    $region32: #{tpu_custom_call.1} parent=1 // pred_region
      %s1848 = ssub.s32 32, 32
      %1849 = vsyncadd [#allocation4], %s1848
      %s1851 = sshll.u32 [#allocation3], 4
      %s1852 = int_to_ptr.vmem [resolvable:$true] %s1851
      %1854 = dma.vmem_to_hbm [thread:$0]  %s1852, 32, %s7, [#allocation4]
    $region33: #{tpu_custom_call.1} parent=1 // pred_fallthru
      _
    // Predicated region
    $region34: #{tpu_custom_call.1} parent=1 // pred_check
      _
    $region35: #{tpu_custom_call.1} parent=1 // pred_check_branch
      %1856 = sbr.rel (0) target = $region37
    $region36: #{tpu_custom_call.1} parent=1 // pred_region
      %1857 = dma.done [#allocation4], 32
    $region37: #{tpu_custom_call.1} parent=1 // pred_fallthru
      _
    %1858 = vsyncpa [#allocation4], 1

</llo_original>
